<compile_context>
chip_gen: v5e
topology: v5e:2x2
jax: 0.10.0
libtpu: 0.0.40
codegen_flags: <defaults>
</compile_context>

<pallas_src>
import jax
import jax.numpy as jnp
from jax.experimental import pallas as pl
from jax.experimental.pallas import tpu as pltpu


# ----------------------------------------------------------------------------
# Pallas kernels
# ----------------------------------------------------------------------------

def _branch_kernel(w_ref, b_ref, xp_ref, dist_ref):
    """Fused conv3x3+bias+ReLU -> min/max norm -> avg-map -> cos distance.

    w_ref:   SMEM (Cd*C*9,) flattened conv weights (OIHW order)
    b_ref:   SMEM (Cd,) bias
    xp_ref:  VMEM (1, C, H+2, W+2) zero-padded feats for one batch element
    dist_ref:VMEM (1, Cd, H, W) distance map output
    """
    C = xp_ref.shape[1]
    Cd = dist_ref.shape[1]
    H = dist_ref.shape[2]
    W = dist_ref.shape[3]

    # channel-mean feature map, then row-mean x col-mean outer product
    feats = xp_ref[0, :, 1:H + 1, 1:W + 1]                  # (C, H, W) interior
    avg = jnp.sum(feats, axis=0) * (1.0 / C)                 # (H, W)
    ho = jnp.mean(avg, axis=1, keepdims=True)                # (H, 1)  mean over W
    la = jnp.mean(avg, axis=0, keepdims=True)                # (1, W)  mean over H
    avg_map = ho * la                                        # (H, W)

    # in-kernel im2col: 9 shifted slabs per input channel, VPU scalar-FMAs
    accs = [jnp.zeros((H, W), jnp.float32) + b_ref[co] for co in range(Cd)]
    for c in range(C):
        for k in range(9):
            dy, dx = k // 3, k % 3
            slab = xp_ref[0, c, dy:dy + H, dx:dx + W]        # (H, W)
            for co in range(Cd):
                accs[co] = accs[co] + w_ref[(co * C + c) * 9 + k] * slab

    for co in range(Cd):
        basic = jnp.maximum(accs[co], 0.0)                   # ReLU
        bmax = jnp.max(jnp.max(basic, axis=1, keepdims=True), axis=0, keepdims=True)
        bmin = jnp.min(jnp.min(basic, axis=1, keepdims=True), axis=0, keepdims=True)
        norm = (basic - bmin) / (bmax - bmin + 1e-7)
        dist_ref[0, co] = jnp.cos((norm - avg_map) * (0.5 * jnp.pi))


def _combine_kernel(in_ref, f_ref, d_ref, o_ref):
    """out = input + max_k( f_k * (1 + d_k) )   (lane dim = H*W).

    in_ref: (1, C, N)      f_ref: (1, K, C, N)     d_ref: (1, K, 1, N)
    K = 1 for identity / nearest-resize levels; K = kh*kw strided window views
    for adaptive-max-pool levels.
    """
    scaled = f_ref[0] * (1.0 + d_ref[0])                     # (K, C, N)
    o_ref[0] = in_ref[0] + jnp.max(scaled, axis=0)


# ----------------------------------------------------------------------------
# Pallas wrappers
# ----------------------------------------------------------------------------

def branch_distance_map(feats, w, b):
    """feats (B,C,H,W), w (Cd,C,3,3), b (Cd,) -> distance map (B,Cd,H,W)."""
    B, C, H, W = feats.shape
    Cd = w.shape[0]
    xp = jnp.pad(feats, ((0, 0), (0, 0), (1, 1), (1, 1)))
    wflat = w.reshape(Cd * C * 9).astype(jnp.float32)
    bflat = b.reshape(Cd).astype(jnp.float32)

    return pl.pallas_call(
        _branch_kernel,
        out_shape=jax.ShapeDtypeStruct((B, Cd, H, W), jnp.float32),
        grid=(B,),
        in_specs=[
            pl.BlockSpec(memory_space=pltpu.MemorySpace.SMEM),
            pl.BlockSpec(memory_space=pltpu.MemorySpace.SMEM),
            pl.BlockSpec((1, C, H + 2, W + 2), lambda i: (i, 0, 0, 0)),
        ],
        out_specs=pl.BlockSpec((1, Cd, H, W), lambda i: (i, 0, 0, 0)),
        compiler_params=pltpu.CompilerParams(dimension_semantics=("parallel",)),
    )(wflat, bflat, xp)


def combine_level(inp, feats, dist_ch, mode, out_size):
    """One fused pallas_call per level: out = inp + resample(feats*(1+d)).

    inp: (B,C,oh,ow)  feats: (B,C,Hs,Ws)  dist_ch: (B,1,Hs,Ws)
    mode: 'interp' (nearest resize) or 'pool' (adaptive max pool).
    """
    B, C, oh, ow = inp.shape
    Hs, Ws = feats.shape[2], feats.shape[3]

    if mode == "interp":
        # nearest resize commutes with the pointwise residual -> gather first
        ridx = (jnp.arange(oh) * Hs) // oh
        cidx = (jnp.arange(ow) * Ws) // ow
        f_views = feats[:, :, ridx[:, None], cidx[None, :]][:, None]     # (B,1,C,oh,ow)
        d_views = dist_ch[:, :, ridx[:, None], cidx[None, :]][:, None]   # (B,1,1,oh,ow)
    else:  # adaptive max pool, integer-ratio bins
        # TODO(synk): non-integer adaptive-max-pool bins (odd pyramid shapes)
        # are not supported by this strided-view decomposition.
        assert Hs % oh == 0 and Ws % ow == 0
        kh, kw = Hs // oh, Ws // ow
        fv = [feats[:, :, ky::kh, kx::kw] for ky in range(kh) for kx in range(kw)]
        dv = [dist_ch[:, :, ky::kh, kx::kw] for ky in range(kh) for kx in range(kw)]
        f_views = jnp.stack(fv, axis=1)                                   # (B,K,C,oh,ow)
        d_views = jnp.stack(dv, axis=1)                                   # (B,K,1,oh,ow)

    K = f_views.shape[1]
    N = oh * ow
    f_flat = f_views.reshape(B, K, C, N)
    d_flat = d_views.reshape(B, K, 1, N)
    in_flat = inp.reshape(B, C, N)

    out = pl.pallas_call(
        _combine_kernel,
        out_shape=jax.ShapeDtypeStruct((B, C, N), inp.dtype),
        grid=(B,),
        in_specs=[
            pl.BlockSpec((1, C, N), lambda i: (i, 0, 0)),
            pl.BlockSpec((1, K, C, N), lambda i: (i, 0, 0, 0)),
            pl.BlockSpec((1, K, 1, N), lambda i: (i, 0, 0, 0)),
        ],
        out_specs=pl.BlockSpec((1, C, N), lambda i: (i, 0, 0)),
        compiler_params=pltpu.CompilerParams(dimension_semantics=("parallel",)),
    )(in_flat, f_flat, d_flat)
    return out.reshape(B, C, oh, ow)


# ----------------------------------------------------------------------------
# Plain-JAX glue (resampling between pyramid levels — pure index plumbing)
# ----------------------------------------------------------------------------

def interpolate_nearest(x, size):
    """F.interpolate(..., mode='nearest'): src = floor(dst * in / out)."""
    B, C, H, W = x.shape
    oh, ow = size
    ridx = (jnp.arange(oh) * H) // oh
    cidx = (jnp.arange(ow) * W) // ow
    return x[:, :, ridx[:, None], cidx[None, :]]


def adaptive_max_pool(x, size):
    """F.adaptive_max_pool2d for integer-ratio shapes (true for FPN pyramids)."""
    B, C, H, W = x.shape
    oh, ow = size
    # TODO(synk): non-integer adaptive pooling bins unsupported.
    assert H % oh == 0 and W % ow == 0
    kh, kw = H // oh, W // ow
    return x.reshape(B, C, oh, kh, ow, kw).max(axis=(3, 5))


# ----------------------------------------------------------------------------
# FPNCROSS forward
# ----------------------------------------------------------------------------

def init_params(key, in_channels, num_levels):
    mid = int(num_levels * 0.5)
    cout_high = num_levels - mid
    cout_low = mid

    def xavier_uniform(k, shape):
        fan_in = shape[1] * shape[2] * shape[3]
        fan_out = shape[0] * shape[2] * shape[3]
        limit = (6.0 / (fan_in + fan_out)) ** 0.5
        return jax.random.uniform(k, shape, jnp.float32, -limit, limit)

    k1, k2 = jax.random.split(key)
    return {
        "w_high": xavier_uniform(k1, (cout_high, in_channels, 3, 3)),
        "b_high": jnp.zeros((cout_high,), jnp.float32),
        "w_low": xavier_uniform(k2, (cout_low, in_channels, 3, 3)),
        "b_low": jnp.zeros((cout_low,), jnp.float32),
    }


def fpn_cross_forward(inputs, params, num_levels):
    assert len(inputs) == num_levels
    mid = int(num_levels * 0.5)
    low_level = int((mid - 1) * 0.5)
    high_level = int((num_levels + mid) * 0.5)
    high_size = inputs[high_level].shape[2:]
    low_size = inputs[low_level].shape[2:]

    # ---- high branch feats (resample + average: index glue) ----
    high_feats = sum(
        interpolate_nearest(inputs[i], high_size) for i in range(mid, num_levels)
    ) / (num_levels - mid)
    high_dist = branch_distance_map(high_feats, params["w_high"], params["b_high"])

    # ---- low branch feats ----
    low_feats_list = []
    for i in range(mid):
        if i < low_level:
            low_feats_list.append(adaptive_max_pool(inputs[i], low_size))
        else:
            low_feats_list.append(interpolate_nearest(inputs[i], low_size))
    low_feats = sum(low_feats_list) / mid
    low_dist = branch_distance_map(low_feats, params["w_low"], params["b_low"])

    # ---- combine: one fused pallas_call per level ----
    outs = []
    for i in range(num_levels):
        out_size = inputs[i].shape[2:]
        if i >= mid:
            feats, dist, ch = high_feats, high_dist, i - mid
            mode = "interp" if i < high_level else "pool"
        else:
            feats, dist, ch = low_feats, low_dist, i
            mode = "interp" if i < low_level else "pool"
        outs.append(combine_level(inputs[i], feats, dist[:, ch:ch + 1], mode, out_size))
    return tuple(outs)


# ----------------------------------------------------------------------------
# Pure-JAX reference (for a numerical self-check)
# ----------------------------------------------------------------------------

def _ref_conv3x3_relu(x, w, b):
    y = jax.lax.conv_general_dilated(
        x, w, window_strides=(1, 1), padding=((1, 1), (1, 1)),
        dimension_numbers=("NCHW", "OIHW", "NCHW"))
    return jnp.maximum(y + b[None, :, None, None], 0.0)


def _ref_distance(basic, feats):
    bmax = jnp.max(basic, axis=(2, 3), keepdims=True)
    bmin = jnp.min(basic, axis=(2, 3), keepdims=True)
    norm = (basic - bmin) / (bmax - bmin + 1e-7)
    c = feats.shape[1]
    avg = jnp.sum(feats, axis=1, keepdims=True) / c
    ho = jnp.mean(avg, axis=3, keepdims=True)
    la = jnp.mean(avg, axis=2, keepdims=True)
    return jnp.cos((norm - ho * la) * (jnp.pi / 2))


def fpn_cross_reference(inputs, params, num_levels):
    mid = int(num_levels * 0.5)
    low_level = int((mid - 1) * 0.5)
    high_level = int((num_levels + mid) * 0.5)
    high_size = inputs[high_level].shape[2:]
    low_size = inputs[low_level].shape[2:]

    high_feats = sum(
        interpolate_nearest(inputs[i], high_size) for i in range(mid, num_levels)
    ) / (num_levels - mid)
    high_dist = _ref_distance(
        _ref_conv3x3_relu(high_feats, params["w_high"], params["b_high"]), high_feats)

    low_feats_list = []
    for i in range(mid):
        if i < low_level:
            low_feats_list.append(adaptive_max_pool(inputs[i], low_size))
        else:
            low_feats_list.append(interpolate_nearest(inputs[i], low_size))
    low_feats = sum(low_feats_list) / mid
    low_dist = _ref_distance(
        _ref_conv3x3_relu(low_feats, params["w_low"], params["b_low"]), low_feats)

    outs = []
    for i in range(num_levels):
        out_size = inputs[i].shape[2:]
        if i >= mid:
            residual = high_feats + high_feats * high_dist[:, i - mid:i - mid + 1]
            if i < high_level:
                residual = interpolate_nearest(residual, out_size)
            else:
                residual = adaptive_max_pool(residual, out_size)
        else:
            residual = low_feats + low_feats * low_dist[:, i:i + 1]
            if i < low_level:
                residual = interpolate_nearest(residual, out_size)
            else:
                residual = adaptive_max_pool(residual, out_size)
        outs.append(inputs[i] + residual)
    return tuple(outs)


# ----------------------------------------------------------------------------
# main
# ----------------------------------------------------------------------------

if __name__ == "__main__":
    key = jax.random.PRNGKey(0)
    num_levels = 4
    in_channels = 8
    batch = 2
    spatials = [32, 16, 8, 4]  # FPN pyramid (stride-2 between levels)

    keys = jax.random.split(key, num_levels + 1)
    inputs = [
        jax.random.normal(keys[i], (batch, in_channels, s, s), jnp.float32)
        for i, s in enumerate(spatials)
    ]
    params = init_params(keys[-1], in_channels, num_levels)

    outs = fpn_cross_forward(inputs, params, num_levels)
    outs = jax.block_until_ready(outs)

    ref_outs = fpn_cross_reference(inputs, params, num_levels)
    ref_outs = jax.block_until_ready(ref_outs)

    for o, x, r in zip(outs, inputs, ref_outs):
        assert o.shape == x.shape and o.dtype == x.dtype
        assert bool(jnp.all(jnp.isfinite(o)))
        err = float(jnp.max(jnp.abs(o - r)))
        assert err < 1e-3, f"mismatch vs reference: {err}"

    print("KERNEL_OK")
</pallas_src>

<mosaic_0001>
module attributes {stable_mosaic.version = 11 : i64} {
  func.func @_branch_kernel(%arg0: i32, %arg1: memref<144xf32, #tpu.memory_space<smem>>, %arg2: memref<2xf32, #tpu.memory_space<smem>>, %arg3: memref<1x8x6x6xf32, #tpu.memory_space<vmem>>, %arg4: memref<1x2x4x4xf32, #tpu.memory_space<vmem>>) attributes {dimension_semantics = [#tpu.dimension_semantics<parallel>], iteration_bounds = array<i64: 2>, scalar_prefetch = 0 : i64, scratch_operands = 0 : i64, tpu.core_type = #tpu.core_type<tc>, window_params = [{transform_indices = @transform_0, window_bounds = array<i64: 144>}, {transform_indices = @transform_1, window_bounds = array<i64: 2>}, {transform_indices = @transform_2, window_bounds = array<i64: 1, 8, 6, 6>}, {transform_indices = @transform_3, window_bounds = array<i64: 1, 2, 4, 4>}]} {
    %c0 = arith.constant 0 : index
    %c0_0 = arith.constant 0 : index
    %c1 = arith.constant 1 : index
    %c1_1 = arith.constant 1 : index
    %0 = vector.load %arg3[%c0, %c0_0, %c1, %c1_1] : memref<1x8x6x6xf32, #tpu.memory_space<vmem>>, vector<1x8x4x4xf32>
    %1 = vector.shape_cast %0 : vector<1x8x4x4xf32> to vector<8x4x4xf32>
    %cst = arith.constant dense<0.000000e+00> : vector<4x4xf32>
    %2 = vector.multi_reduction <add>, %1, %cst [0] : vector<8x4x4xf32> to vector<4x4xf32>
    %cst_2 = arith.constant 1.250000e-01 : f32
    %3 = vector.broadcast %cst_2 : f32 to vector<4x4xf32>
    %4 = arith.mulf %2, %3 : vector<4x4xf32>
    %cst_3 = arith.constant dense<0.000000e+00> : vector<4xf32>
    %5 = vector.multi_reduction <add>, %4, %cst_3 [1] : vector<4x4xf32> to vector<4xf32>
    %6 = vector.shape_cast %5 : vector<4xf32> to vector<4x1xf32>
    %cst_4 = arith.constant 4.000000e+00 : f32
    %7 = vector.broadcast %cst_4 : f32 to vector<4x1xf32>
    %8 = arith.divf %6, %7 : vector<4x1xf32>
    %cst_5 = arith.constant dense<0.000000e+00> : vector<4xf32>
    %9 = vector.multi_reduction <add>, %4, %cst_5 [0] : vector<4x4xf32> to vector<4xf32>
    %10 = vector.shape_cast %9 : vector<4xf32> to vector<1x4xf32>
    %cst_6 = arith.constant 4.000000e+00 : f32
    %11 = vector.broadcast %cst_6 : f32 to vector<1x4xf32>
    %12 = arith.divf %10, %11 : vector<1x4xf32>
    %13 = vector.broadcast %8 : vector<4x1xf32> to vector<4x4xf32>
    %14 = vector.broadcast %12 : vector<1x4xf32> to vector<4x4xf32>
    %15 = arith.mulf %13, %14 : vector<4x4xf32>
    %cst_7 = arith.constant 0.000000e+00 : f32
    %16 = vector.broadcast %cst_7 : f32 to vector<4x4xf32>
    %c0_8 = arith.constant 0 : index
    %17 = memref.load %arg2[%c0_8] : memref<2xf32, #tpu.memory_space<smem>>
    %18 = vector.broadcast %17 : f32 to vector<4x4xf32>
    %19 = arith.addf %16, %18 : vector<4x4xf32>
    %cst_9 = arith.constant 0.000000e+00 : f32
    %20 = vector.broadcast %cst_9 : f32 to vector<4x4xf32>
    %c1_10 = arith.constant 1 : index
    %21 = memref.load %arg2[%c1_10] : memref<2xf32, #tpu.memory_space<smem>>
    %22 = vector.broadcast %21 : f32 to vector<4x4xf32>
    %23 = arith.addf %20, %22 : vector<4x4xf32>
    %c0_11 = arith.constant 0 : index
    %c0_12 = arith.constant 0 : index
    %c0_13 = arith.constant 0 : index
    %c0_14 = arith.constant 0 : index
    %24 = vector.load %arg3[%c0_11, %c0_12, %c0_13, %c0_14] : memref<1x8x6x6xf32, #tpu.memory_space<vmem>>, vector<1x1x4x4xf32>
    %25 = vector.shape_cast %24 : vector<1x1x4x4xf32> to vector<4x4xf32>
    %c0_15 = arith.constant 0 : index
    %26 = memref.load %arg1[%c0_15] : memref<144xf32, #tpu.memory_space<smem>>
    %27 = vector.broadcast %26 : f32 to vector<4x4xf32>
    %28 = arith.mulf %27, %25 : vector<4x4xf32>
    %29 = arith.addf %19, %28 : vector<4x4xf32>
    %c72 = arith.constant 72 : index
    %30 = memref.load %arg1[%c72] : memref<144xf32, #tpu.memory_space<smem>>
    %31 = vector.broadcast %30 : f32 to vector<4x4xf32>
    %32 = arith.mulf %31, %25 : vector<4x4xf32>
    %33 = arith.addf %23, %32 : vector<4x4xf32>
    %c0_16 = arith.constant 0 : index
    %c0_17 = arith.constant 0 : index
    %c0_18 = arith.constant 0 : index
    %c1_19 = arith.constant 1 : index
    %34 = vector.load %arg3[%c0_16, %c0_17, %c0_18, %c1_19] : memref<1x8x6x6xf32, #tpu.memory_space<vmem>>, vector<1x1x4x4xf32>
    %35 = vector.shape_cast %34 : vector<1x1x4x4xf32> to vector<4x4xf32>
    %c1_20 = arith.constant 1 : index
    %36 = memref.load %arg1[%c1_20] : memref<144xf32, #tpu.memory_space<smem>>
    %37 = vector.broadcast %36 : f32 to vector<4x4xf32>
    %38 = arith.mulf %37, %35 : vector<4x4xf32>
    %39 = arith.addf %29, %38 : vector<4x4xf32>
    %c73 = arith.constant 73 : index
    %40 = memref.load %arg1[%c73] : memref<144xf32, #tpu.memory_space<smem>>
    %41 = vector.broadcast %40 : f32 to vector<4x4xf32>
    %42 = arith.mulf %41, %35 : vector<4x4xf32>
    %43 = arith.addf %33, %42 : vector<4x4xf32>
    %c0_21 = arith.constant 0 : index
    %c0_22 = arith.constant 0 : index
    %c0_23 = arith.constant 0 : index
    %c2 = arith.constant 2 : index
    %44 = vector.load %arg3[%c0_21, %c0_22, %c0_23, %c2] : memref<1x8x6x6xf32, #tpu.memory_space<vmem>>, vector<1x1x4x4xf32>
    %45 = vector.shape_cast %44 : vector<1x1x4x4xf32> to vector<4x4xf32>
    %c2_24 = arith.constant 2 : index
    %46 = memref.load %arg1[%c2_24] : memref<144xf32, #tpu.memory_space<smem>>
    %47 = vector.broadcast %46 : f32 to vector<4x4xf32>
    %48 = arith.mulf %47, %45 : vector<4x4xf32>
    %49 = arith.addf %39, %48 : vector<4x4xf32>
    %c74 = arith.constant 74 : index
    %50 = memref.load %arg1[%c74] : memref<144xf32, #tpu.memory_space<smem>>
    %51 = vector.broadcast %50 : f32 to vector<4x4xf32>
    %52 = arith.mulf %51, %45 : vector<4x4xf32>
    %53 = arith.addf %43, %52 : vector<4x4xf32>
    %c0_25 = arith.constant 0 : index
    %c0_26 = arith.constant 0 : index
    %c1_27 = arith.constant 1 : index
    %c0_28 = arith.constant 0 : index
    %54 = vector.load %arg3[%c0_25, %c0_26, %c1_27, %c0_28] : memref<1x8x6x6xf32, #tpu.memory_space<vmem>>, vector<1x1x4x4xf32>
    %55 = vector.shape_cast %54 : vector<1x1x4x4xf32> to vector<4x4xf32>
    %c3 = arith.constant 3 : index
    %56 = memref.load %arg1[%c3] : memref<144xf32, #tpu.memory_space<smem>>
    %57 = vector.broadcast %56 : f32 to vector<4x4xf32>
    %58 = arith.mulf %57, %55 : vector<4x4xf32>
    %59 = arith.addf %49, %58 : vector<4x4xf32>
    %c75 = arith.constant 75 : index
    %60 = memref.load %arg1[%c75] : memref<144xf32, #tpu.memory_space<smem>>
    %61 = vector.broadcast %60 : f32 to vector<4x4xf32>
    %62 = arith.mulf %61, %55 : vector<4x4xf32>
    %63 = arith.addf %53, %62 : vector<4x4xf32>
    %c0_29 = arith.constant 0 : index
    %c0_30 = arith.constant 0 : index
    %c1_31 = arith.constant 1 : index
    %c1_32 = arith.constant 1 : index
    %64 = vector.load %arg3[%c0_29, %c0_30, %c1_31, %c1_32] : memref<1x8x6x6xf32, #tpu.memory_space<vmem>>, vector<1x1x4x4xf32>
    %65 = vector.shape_cast %64 : vector<1x1x4x4xf32> to vector<4x4xf32>
    %c4 = arith.constant 4 : index
    %66 = memref.load %arg1[%c4] : memref<144xf32, #tpu.memory_space<smem>>
    %67 = vector.broadcast %66 : f32 to vector<4x4xf32>
    %68 = arith.mulf %67, %65 : vector<4x4xf32>
    %69 = arith.addf %59, %68 : vector<4x4xf32>
    %c76 = arith.constant 76 : index
    %70 = memref.load %arg1[%c76] : memref<144xf32, #tpu.memory_space<smem>>
    %71 = vector.broadcast %70 : f32 to vector<4x4xf32>
    %72 = arith.mulf %71, %65 : vector<4x4xf32>
    %73 = arith.addf %63, %72 : vector<4x4xf32>
    %c0_33 = arith.constant 0 : index
    %c0_34 = arith.constant 0 : index
    %c1_35 = arith.constant 1 : index
    %c2_36 = arith.constant 2 : index
    %74 = vector.load %arg3[%c0_33, %c0_34, %c1_35, %c2_36] : memref<1x8x6x6xf32, #tpu.memory_space<vmem>>, vector<1x1x4x4xf32>
    %75 = vector.shape_cast %74 : vector<1x1x4x4xf32> to vector<4x4xf32>
    %c5 = arith.constant 5 : index
    %76 = memref.load %arg1[%c5] : memref<144xf32, #tpu.memory_space<smem>>
    %77 = vector.broadcast %76 : f32 to vector<4x4xf32>
    %78 = arith.mulf %77, %75 : vector<4x4xf32>
    %79 = arith.addf %69, %78 : vector<4x4xf32>
    %c77 = arith.constant 77 : index
    %80 = memref.load %arg1[%c77] : memref<144xf32, #tpu.memory_space<smem>>
    %81 = vector.broadcast %80 : f32 to vector<4x4xf32>
    %82 = arith.mulf %81, %75 : vector<4x4xf32>
    %83 = arith.addf %73, %82 : vector<4x4xf32>
    %c0_37 = arith.constant 0 : index
    %c0_38 = arith.constant 0 : index
    %c2_39 = arith.constant 2 : index
    %c0_40 = arith.constant 0 : index
    %84 = vector.load %arg3[%c0_37, %c0_38, %c2_39, %c0_40] : memref<1x8x6x6xf32, #tpu.memory_space<vmem>>, vector<1x1x4x4xf32>
    %85 = vector.shape_cast %84 : vector<1x1x4x4xf32> to vector<4x4xf32>
    %c6 = arith.constant 6 : index
    %86 = memref.load %arg1[%c6] : memref<144xf32, #tpu.memory_space<smem>>
    %87 = vector.broadcast %86 : f32 to vector<4x4xf32>
    %88 = arith.mulf %87, %85 : vector<4x4xf32>
    %89 = arith.addf %79, %88 : vector<4x4xf32>
    %c78 = arith.constant 78 : index
    %90 = memref.load %arg1[%c78] : memref<144xf32, #tpu.memory_space<smem>>
    %91 = vector.broadcast %90 : f32 to vector<4x4xf32>
    %92 = arith.mulf %91, %85 : vector<4x4xf32>
    %93 = arith.addf %83, %92 : vector<4x4xf32>
    %c0_41 = arith.constant 0 : index
    %c0_42 = arith.constant 0 : index
    %c2_43 = arith.constant 2 : index
    %c1_44 = arith.constant 1 : index
    %94 = vector.load %arg3[%c0_41, %c0_42, %c2_43, %c1_44] : memref<1x8x6x6xf32, #tpu.memory_space<vmem>>, vector<1x1x4x4xf32>
    %95 = vector.shape_cast %94 : vector<1x1x4x4xf32> to vector<4x4xf32>
    %c7 = arith.constant 7 : index
    %96 = memref.load %arg1[%c7] : memref<144xf32, #tpu.memory_space<smem>>
    %97 = vector.broadcast %96 : f32 to vector<4x4xf32>
    %98 = arith.mulf %97, %95 : vector<4x4xf32>
    %99 = arith.addf %89, %98 : vector<4x4xf32>
    %c79 = arith.constant 79 : index
    %100 = memref.load %arg1[%c79] : memref<144xf32, #tpu.memory_space<smem>>
    %101 = vector.broadcast %100 : f32 to vector<4x4xf32>
    %102 = arith.mulf %101, %95 : vector<4x4xf32>
    %103 = arith.addf %93, %102 : vector<4x4xf32>
    %c0_45 = arith.constant 0 : index
    %c0_46 = arith.constant 0 : index
    %c2_47 = arith.constant 2 : index
    %c2_48 = arith.constant 2 : index
    %104 = vector.load %arg3[%c0_45, %c0_46, %c2_47, %c2_48] : memref<1x8x6x6xf32, #tpu.memory_space<vmem>>, vector<1x1x4x4xf32>
    %105 = vector.shape_cast %104 : vector<1x1x4x4xf32> to vector<4x4xf32>
    %c8 = arith.constant 8 : index
    %106 = memref.load %arg1[%c8] : memref<144xf32, #tpu.memory_space<smem>>
    %107 = vector.broadcast %106 : f32 to vector<4x4xf32>
    %108 = arith.mulf %107, %105 : vector<4x4xf32>
    %109 = arith.addf %99, %108 : vector<4x4xf32>
    %c80 = arith.constant 80 : index
    %110 = memref.load %arg1[%c80] : memref<144xf32, #tpu.memory_space<smem>>
    %111 = vector.broadcast %110 : f32 to vector<4x4xf32>
    %112 = arith.mulf %111, %105 : vector<4x4xf32>
    %113 = arith.addf %103, %112 : vector<4x4xf32>
    %c0_49 = arith.constant 0 : index
    %c1_50 = arith.constant 1 : index
    %c0_51 = arith.constant 0 : index
    %c0_52 = arith.constant 0 : index
    %114 = vector.load %arg3[%c0_49, %c1_50, %c0_51, %c0_52] : memref<1x8x6x6xf32, #tpu.memory_space<vmem>>, vector<1x1x4x4xf32>
    %115 = vector.shape_cast %114 : vector<1x1x4x4xf32> to vector<4x4xf32>
    %c9 = arith.constant 9 : index
    %116 = memref.load %arg1[%c9] : memref<144xf32, #tpu.memory_space<smem>>
    %117 = vector.broadcast %116 : f32 to vector<4x4xf32>
    %118 = arith.mulf %117, %115 : vector<4x4xf32>
    %119 = arith.addf %109, %118 : vector<4x4xf32>
    %c81 = arith.constant 81 : index
    %120 = memref.load %arg1[%c81] : memref<144xf32, #tpu.memory_space<smem>>
    %121 = vector.broadcast %120 : f32 to vector<4x4xf32>
    %122 = arith.mulf %121, %115 : vector<4x4xf32>
    %123 = arith.addf %113, %122 : vector<4x4xf32>
    %c0_53 = arith.constant 0 : index
    %c1_54 = arith.constant 1 : index
    %c0_55 = arith.constant 0 : index
    %c1_56 = arith.constant 1 : index
    %124 = vector.load %arg3[%c0_53, %c1_54, %c0_55, %c1_56] : memref<1x8x6x6xf32, #tpu.memory_space<vmem>>, vector<1x1x4x4xf32>
    %125 = vector.shape_cast %124 : vector<1x1x4x4xf32> to vector<4x4xf32>
    %c10 = arith.constant 10 : index
    %126 = memref.load %arg1[%c10] : memref<144xf32, #tpu.memory_space<smem>>
    %127 = vector.broadcast %126 : f32 to vector<4x4xf32>
    %128 = arith.mulf %127, %125 : vector<4x4xf32>
    %129 = arith.addf %119, %128 : vector<4x4xf32>
    %c82 = arith.constant 82 : index
    %130 = memref.load %arg1[%c82] : memref<144xf32, #tpu.memory_space<smem>>
    %131 = vector.broadcast %130 : f32 to vector<4x4xf32>
    %132 = arith.mulf %131, %125 : vector<4x4xf32>
    %133 = arith.addf %123, %132 : vector<4x4xf32>
    %c0_57 = arith.constant 0 : index
    %c1_58 = arith.constant 1 : index
    %c0_59 = arith.constant 0 : index
    %c2_60 = arith.constant 2 : index
    %134 = vector.load %arg3[%c0_57, %c1_58, %c0_59, %c2_60] : memref<1x8x6x6xf32, #tpu.memory_space<vmem>>, vector<1x1x4x4xf32>
    %135 = vector.shape_cast %134 : vector<1x1x4x4xf32> to vector<4x4xf32>
    %c11 = arith.constant 11 : index
    %136 = memref.load %arg1[%c11] : memref<144xf32, #tpu.memory_space<smem>>
    %137 = vector.broadcast %136 : f32 to vector<4x4xf32>
    %138 = arith.mulf %137, %135 : vector<4x4xf32>
    %139 = arith.addf %129, %138 : vector<4x4xf32>
    %c83 = arith.constant 83 : index
    %140 = memref.load %arg1[%c83] : memref<144xf32, #tpu.memory_space<smem>>
    %141 = vector.broadcast %140 : f32 to vector<4x4xf32>
    %142 = arith.mulf %141, %135 : vector<4x4xf32>
    %143 = arith.addf %133, %142 : vector<4x4xf32>
    %c0_61 = arith.constant 0 : index
    %c1_62 = arith.constant 1 : index
    %c1_63 = arith.constant 1 : index
    %c0_64 = arith.constant 0 : index
    %144 = vector.load %arg3[%c0_61, %c1_62, %c1_63, %c0_64] : memref<1x8x6x6xf32, #tpu.memory_space<vmem>>, vector<1x1x4x4xf32>
    %145 = vector.shape_cast %144 : vector<1x1x4x4xf32> to vector<4x4xf32>
    %c12 = arith.constant 12 : index
    %146 = memref.load %arg1[%c12] : memref<144xf32, #tpu.memory_space<smem>>
    %147 = vector.broadcast %146 : f32 to vector<4x4xf32>
    %148 = arith.mulf %147, %145 : vector<4x4xf32>
    %149 = arith.addf %139, %148 : vector<4x4xf32>
    %c84 = arith.constant 84 : index
    %150 = memref.load %arg1[%c84] : memref<144xf32, #tpu.memory_space<smem>>
    %151 = vector.broadcast %150 : f32 to vector<4x4xf32>
    %152 = arith.mulf %151, %145 : vector<4x4xf32>
    %153 = arith.addf %143, %152 : vector<4x4xf32>
    %c0_65 = arith.constant 0 : index
    %c1_66 = arith.constant 1 : index
    %c1_67 = arith.constant 1 : index
    %c1_68 = arith.constant 1 : index
    %154 = vector.load %arg3[%c0_65, %c1_66, %c1_67, %c1_68] : memref<1x8x6x6xf32, #tpu.memory_space<vmem>>, vector<1x1x4x4xf32>
    %155 = vector.shape_cast %154 : vector<1x1x4x4xf32> to vector<4x4xf32>
    %c13 = arith.constant 13 : index
    %156 = memref.load %arg1[%c13] : memref<144xf32, #tpu.memory_space<smem>>
    %157 = vector.broadcast %156 : f32 to vector<4x4xf32>
    %158 = arith.mulf %157, %155 : vector<4x4xf32>
    %159 = arith.addf %149, %158 : vector<4x4xf32>
    %c85 = arith.constant 85 : index
    %160 = memref.load %arg1[%c85] : memref<144xf32, #tpu.memory_space<smem>>
    %161 = vector.broadcast %160 : f32 to vector<4x4xf32>
    %162 = arith.mulf %161, %155 : vector<4x4xf32>
    %163 = arith.addf %153, %162 : vector<4x4xf32>
    %c0_69 = arith.constant 0 : index
    %c1_70 = arith.constant 1 : index
    %c1_71 = arith.constant 1 : index
    %c2_72 = arith.constant 2 : index
    %164 = vector.load %arg3[%c0_69, %c1_70, %c1_71, %c2_72] : memref<1x8x6x6xf32, #tpu.memory_space<vmem>>, vector<1x1x4x4xf32>
    %165 = vector.shape_cast %164 : vector<1x1x4x4xf32> to vector<4x4xf32>
    %c14 = arith.constant 14 : index
    %166 = memref.load %arg1[%c14] : memref<144xf32, #tpu.memory_space<smem>>
    %167 = vector.broadcast %166 : f32 to vector<4x4xf32>
    %168 = arith.mulf %167, %165 : vector<4x4xf32>
    %169 = arith.addf %159, %168 : vector<4x4xf32>
    %c86 = arith.constant 86 : index
    %170 = memref.load %arg1[%c86] : memref<144xf32, #tpu.memory_space<smem>>
    %171 = vector.broadcast %170 : f32 to vector<4x4xf32>
    %172 = arith.mulf %171, %165 : vector<4x4xf32>
    %173 = arith.addf %163, %172 : vector<4x4xf32>
    %c0_73 = arith.constant 0 : index
    %c1_74 = arith.constant 1 : index
    %c2_75 = arith.constant 2 : index
    %c0_76 = arith.constant 0 : index
    %174 = vector.load %arg3[%c0_73, %c1_74, %c2_75, %c0_76] : memref<1x8x6x6xf32, #tpu.memory_space<vmem>>, vector<1x1x4x4xf32>
    %175 = vector.shape_cast %174 : vector<1x1x4x4xf32> to vector<4x4xf32>
    %c15 = arith.constant 15 : index
    %176 = memref.load %arg1[%c15] : memref<144xf32, #tpu.memory_space<smem>>
    %177 = vector.broadcast %176 : f32 to vector<4x4xf32>
    %178 = arith.mulf %177, %175 : vector<4x4xf32>
    %179 = arith.addf %169, %178 : vector<4x4xf32>
    %c87 = arith.constant 87 : index
    %180 = memref.load %arg1[%c87] : memref<144xf32, #tpu.memory_space<smem>>
    %181 = vector.broadcast %180 : f32 to vector<4x4xf32>
    %182 = arith.mulf %181, %175 : vector<4x4xf32>
    %183 = arith.addf %173, %182 : vector<4x4xf32>
    %c0_77 = arith.constant 0 : index
    %c1_78 = arith.constant 1 : index
    %c2_79 = arith.constant 2 : index
    %c1_80 = arith.constant 1 : index
    %184 = vector.load %arg3[%c0_77, %c1_78, %c2_79, %c1_80] : memref<1x8x6x6xf32, #tpu.memory_space<vmem>>, vector<1x1x4x4xf32>
    %185 = vector.shape_cast %184 : vector<1x1x4x4xf32> to vector<4x4xf32>
    %c16 = arith.constant 16 : index
    %186 = memref.load %arg1[%c16] : memref<144xf32, #tpu.memory_space<smem>>
    %187 = vector.broadcast %186 : f32 to vector<4x4xf32>
    %188 = arith.mulf %187, %185 : vector<4x4xf32>
    %189 = arith.addf %179, %188 : vector<4x4xf32>
    %c88 = arith.constant 88 : index
    %190 = memref.load %arg1[%c88] : memref<144xf32, #tpu.memory_space<smem>>
    %191 = vector.broadcast %190 : f32 to vector<4x4xf32>
    %192 = arith.mulf %191, %185 : vector<4x4xf32>
    %193 = arith.addf %183, %192 : vector<4x4xf32>
    %c0_81 = arith.constant 0 : index
    %c1_82 = arith.constant 1 : index
    %c2_83 = arith.constant 2 : index
    %c2_84 = arith.constant 2 : index
    %194 = vector.load %arg3[%c0_81, %c1_82, %c2_83, %c2_84] : memref<1x8x6x6xf32, #tpu.memory_space<vmem>>, vector<1x1x4x4xf32>
    %195 = vector.shape_cast %194 : vector<1x1x4x4xf32> to vector<4x4xf32>
    %c17 = arith.constant 17 : index
    %196 = memref.load %arg1[%c17] : memref<144xf32, #tpu.memory_space<smem>>
    %197 = vector.broadcast %196 : f32 to vector<4x4xf32>
    %198 = arith.mulf %197, %195 : vector<4x4xf32>
    %199 = arith.addf %189, %198 : vector<4x4xf32>
    %c89 = arith.constant 89 : index
    %200 = memref.load %arg1[%c89] : memref<144xf32, #tpu.memory_space<smem>>
    %201 = vector.broadcast %200 : f32 to vector<4x4xf32>
    %202 = arith.mulf %201, %195 : vector<4x4xf32>
    %203 = arith.addf %193, %202 : vector<4x4xf32>
    %c0_85 = arith.constant 0 : index
    %c2_86 = arith.constant 2 : index
    %c0_87 = arith.constant 0 : index
    %c0_88 = arith.constant 0 : index
    %204 = vector.load %arg3[%c0_85, %c2_86, %c0_87, %c0_88] : memref<1x8x6x6xf32, #tpu.memory_space<vmem>>, vector<1x1x4x4xf32>
    %205 = vector.shape_cast %204 : vector<1x1x4x4xf32> to vector<4x4xf32>
    %c18 = arith.constant 18 : index
    %206 = memref.load %arg1[%c18] : memref<144xf32, #tpu.memory_space<smem>>
    %207 = vector.broadcast %206 : f32 to vector<4x4xf32>
    %208 = arith.mulf %207, %205 : vector<4x4xf32>
    %209 = arith.addf %199, %208 : vector<4x4xf32>
    %c90 = arith.constant 90 : index
    %210 = memref.load %arg1[%c90] : memref<144xf32, #tpu.memory_space<smem>>
    %211 = vector.broadcast %210 : f32 to vector<4x4xf32>
    %212 = arith.mulf %211, %205 : vector<4x4xf32>
    %213 = arith.addf %203, %212 : vector<4x4xf32>
    %c0_89 = arith.constant 0 : index
    %c2_90 = arith.constant 2 : index
    %c0_91 = arith.constant 0 : index
    %c1_92 = arith.constant 1 : index
    %214 = vector.load %arg3[%c0_89, %c2_90, %c0_91, %c1_92] : memref<1x8x6x6xf32, #tpu.memory_space<vmem>>, vector<1x1x4x4xf32>
    %215 = vector.shape_cast %214 : vector<1x1x4x4xf32> to vector<4x4xf32>
    %c19 = arith.constant 19 : index
    %216 = memref.load %arg1[%c19] : memref<144xf32, #tpu.memory_space<smem>>
    %217 = vector.broadcast %216 : f32 to vector<4x4xf32>
    %218 = arith.mulf %217, %215 : vector<4x4xf32>
    %219 = arith.addf %209, %218 : vector<4x4xf32>
    %c91 = arith.constant 91 : index
    %220 = memref.load %arg1[%c91] : memref<144xf32, #tpu.memory_space<smem>>
    %221 = vector.broadcast %220 : f32 to vector<4x4xf32>
    %222 = arith.mulf %221, %215 : vector<4x4xf32>
    %223 = arith.addf %213, %222 : vector<4x4xf32>
    %c0_93 = arith.constant 0 : index
    %c2_94 = arith.constant 2 : index
    %c0_95 = arith.constant 0 : index
    %c2_96 = arith.constant 2 : index
    %224 = vector.load %arg3[%c0_93, %c2_94, %c0_95, %c2_96] : memref<1x8x6x6xf32, #tpu.memory_space<vmem>>, vector<1x1x4x4xf32>
    %225 = vector.shape_cast %224 : vector<1x1x4x4xf32> to vector<4x4xf32>
    %c20 = arith.constant 20 : index
    %226 = memref.load %arg1[%c20] : memref<144xf32, #tpu.memory_space<smem>>
    %227 = vector.broadcast %226 : f32 to vector<4x4xf32>
    %228 = arith.mulf %227, %225 : vector<4x4xf32>
    %229 = arith.addf %219, %228 : vector<4x4xf32>
    %c92 = arith.constant 92 : index
    %230 = memref.load %arg1[%c92] : memref<144xf32, #tpu.memory_space<smem>>
    %231 = vector.broadcast %230 : f32 to vector<4x4xf32>
    %232 = arith.mulf %231, %225 : vector<4x4xf32>
    %233 = arith.addf %223, %232 : vector<4x4xf32>
    %c0_97 = arith.constant 0 : index
    %c2_98 = arith.constant 2 : index
    %c1_99 = arith.constant 1 : index
    %c0_100 = arith.constant 0 : index
    %234 = vector.load %arg3[%c0_97, %c2_98, %c1_99, %c0_100] : memref<1x8x6x6xf32, #tpu.memory_space<vmem>>, vector<1x1x4x4xf32>
    %235 = vector.shape_cast %234 : vector<1x1x4x4xf32> to vector<4x4xf32>
    %c21 = arith.constant 21 : index
    %236 = memref.load %arg1[%c21] : memref<144xf32, #tpu.memory_space<smem>>
    %237 = vector.broadcast %236 : f32 to vector<4x4xf32>
    %238 = arith.mulf %237, %235 : vector<4x4xf32>
    %239 = arith.addf %229, %238 : vector<4x4xf32>
    %c93 = arith.constant 93 : index
    %240 = memref.load %arg1[%c93] : memref<144xf32, #tpu.memory_space<smem>>
    %241 = vector.broadcast %240 : f32 to vector<4x4xf32>
    %242 = arith.mulf %241, %235 : vector<4x4xf32>
    %243 = arith.addf %233, %242 : vector<4x4xf32>
    %c0_101 = arith.constant 0 : index
    %c2_102 = arith.constant 2 : index
    %c1_103 = arith.constant 1 : index
    %c1_104 = arith.constant 1 : index
    %244 = vector.load %arg3[%c0_101, %c2_102, %c1_103, %c1_104] : memref<1x8x6x6xf32, #tpu.memory_space<vmem>>, vector<1x1x4x4xf32>
    %245 = vector.shape_cast %244 : vector<1x1x4x4xf32> to vector<4x4xf32>
    %c22 = arith.constant 22 : index
    %246 = memref.load %arg1[%c22] : memref<144xf32, #tpu.memory_space<smem>>
    %247 = vector.broadcast %246 : f32 to vector<4x4xf32>
    %248 = arith.mulf %247, %245 : vector<4x4xf32>
    %249 = arith.addf %239, %248 : vector<4x4xf32>
    %c94 = arith.constant 94 : index
    %250 = memref.load %arg1[%c94] : memref<144xf32, #tpu.memory_space<smem>>
    %251 = vector.broadcast %250 : f32 to vector<4x4xf32>
    %252 = arith.mulf %251, %245 : vector<4x4xf32>
    %253 = arith.addf %243, %252 : vector<4x4xf32>
    %c0_105 = arith.constant 0 : index
    %c2_106 = arith.constant 2 : index
    %c1_107 = arith.constant 1 : index
    %c2_108 = arith.constant 2 : index
    %254 = vector.load %arg3[%c0_105, %c2_106, %c1_107, %c2_108] : memref<1x8x6x6xf32, #tpu.memory_space<vmem>>, vector<1x1x4x4xf32>
    %255 = vector.shape_cast %254 : vector<1x1x4x4xf32> to vector<4x4xf32>
    %c23 = arith.constant 23 : index
    %256 = memref.load %arg1[%c23] : memref<144xf32, #tpu.memory_space<smem>>
    %257 = vector.broadcast %256 : f32 to vector<4x4xf32>
    %258 = arith.mulf %257, %255 : vector<4x4xf32>
    %259 = arith.addf %249, %258 : vector<4x4xf32>
    %c95 = arith.constant 95 : index
    %260 = memref.load %arg1[%c95] : memref<144xf32, #tpu.memory_space<smem>>
    %261 = vector.broadcast %260 : f32 to vector<4x4xf32>
    %262 = arith.mulf %261, %255 : vector<4x4xf32>
    %263 = arith.addf %253, %262 : vector<4x4xf32>
    %c0_109 = arith.constant 0 : index
    %c2_110 = arith.constant 2 : index
    %c2_111 = arith.constant 2 : index
    %c0_112 = arith.constant 0 : index
    %264 = vector.load %arg3[%c0_109, %c2_110, %c2_111, %c0_112] : memref<1x8x6x6xf32, #tpu.memory_space<vmem>>, vector<1x1x4x4xf32>
    %265 = vector.shape_cast %264 : vector<1x1x4x4xf32> to vector<4x4xf32>
    %c24 = arith.constant 24 : index
    %266 = memref.load %arg1[%c24] : memref<144xf32, #tpu.memory_space<smem>>
    %267 = vector.broadcast %266 : f32 to vector<4x4xf32>
    %268 = arith.mulf %267, %265 : vector<4x4xf32>
    %269 = arith.addf %259, %268 : vector<4x4xf32>
    %c96 = arith.constant 96 : index
    %270 = memref.load %arg1[%c96] : memref<144xf32, #tpu.memory_space<smem>>
    %271 = vector.broadcast %270 : f32 to vector<4x4xf32>
    %272 = arith.mulf %271, %265 : vector<4x4xf32>
    %273 = arith.addf %263, %272 : vector<4x4xf32>
    %c0_113 = arith.constant 0 : index
    %c2_114 = arith.constant 2 : index
    %c2_115 = arith.constant 2 : index
    %c1_116 = arith.constant 1 : index
    %274 = vector.load %arg3[%c0_113, %c2_114, %c2_115, %c1_116] : memref<1x8x6x6xf32, #tpu.memory_space<vmem>>, vector<1x1x4x4xf32>
    %275 = vector.shape_cast %274 : vector<1x1x4x4xf32> to vector<4x4xf32>
    %c25 = arith.constant 25 : index
    %276 = memref.load %arg1[%c25] : memref<144xf32, #tpu.memory_space<smem>>
    %277 = vector.broadcast %276 : f32 to vector<4x4xf32>
    %278 = arith.mulf %277, %275 : vector<4x4xf32>
    %279 = arith.addf %269, %278 : vector<4x4xf32>
    %c97 = arith.constant 97 : index
    %280 = memref.load %arg1[%c97] : memref<144xf32, #tpu.memory_space<smem>>
    %281 = vector.broadcast %280 : f32 to vector<4x4xf32>
    %282 = arith.mulf %281, %275 : vector<4x4xf32>
    %283 = arith.addf %273, %282 : vector<4x4xf32>
    %c0_117 = arith.constant 0 : index
    %c2_118 = arith.constant 2 : index
    %c2_119 = arith.constant 2 : index
    %c2_120 = arith.constant 2 : index
    %284 = vector.load %arg3[%c0_117, %c2_118, %c2_119, %c2_120] : memref<1x8x6x6xf32, #tpu.memory_space<vmem>>, vector<1x1x4x4xf32>
    %285 = vector.shape_cast %284 : vector<1x1x4x4xf32> to vector<4x4xf32>
    %c26 = arith.constant 26 : index
    %286 = memref.load %arg1[%c26] : memref<144xf32, #tpu.memory_space<smem>>
    %287 = vector.broadcast %286 : f32 to vector<4x4xf32>
    %288 = arith.mulf %287, %285 : vector<4x4xf32>
    %289 = arith.addf %279, %288 : vector<4x4xf32>
    %c98 = arith.constant 98 : index
    %290 = memref.load %arg1[%c98] : memref<144xf32, #tpu.memory_space<smem>>
    %291 = vector.broadcast %290 : f32 to vector<4x4xf32>
    %292 = arith.mulf %291, %285 : vector<4x4xf32>
    %293 = arith.addf %283, %292 : vector<4x4xf32>
    %c0_121 = arith.constant 0 : index
    %c3_122 = arith.constant 3 : index
    %c0_123 = arith.constant 0 : index
    %c0_124 = arith.constant 0 : index
    %294 = vector.load %arg3[%c0_121, %c3_122, %c0_123, %c0_124] : memref<1x8x6x6xf32, #tpu.memory_space<vmem>>, vector<1x1x4x4xf32>
    %295 = vector.shape_cast %294 : vector<1x1x4x4xf32> to vector<4x4xf32>
    %c27 = arith.constant 27 : index
    %296 = memref.load %arg1[%c27] : memref<144xf32, #tpu.memory_space<smem>>
    %297 = vector.broadcast %296 : f32 to vector<4x4xf32>
    %298 = arith.mulf %297, %295 : vector<4x4xf32>
    %299 = arith.addf %289, %298 : vector<4x4xf32>
    %c99 = arith.constant 99 : index
    %300 = memref.load %arg1[%c99] : memref<144xf32, #tpu.memory_space<smem>>
    %301 = vector.broadcast %300 : f32 to vector<4x4xf32>
    %302 = arith.mulf %301, %295 : vector<4x4xf32>
    %303 = arith.addf %293, %302 : vector<4x4xf32>
    %c0_125 = arith.constant 0 : index
    %c3_126 = arith.constant 3 : index
    %c0_127 = arith.constant 0 : index
    %c1_128 = arith.constant 1 : index
    %304 = vector.load %arg3[%c0_125, %c3_126, %c0_127, %c1_128] : memref<1x8x6x6xf32, #tpu.memory_space<vmem>>, vector<1x1x4x4xf32>
    %305 = vector.shape_cast %304 : vector<1x1x4x4xf32> to vector<4x4xf32>
    %c28 = arith.constant 28 : index
    %306 = memref.load %arg1[%c28] : memref<144xf32, #tpu.memory_space<smem>>
    %307 = vector.broadcast %306 : f32 to vector<4x4xf32>
    %308 = arith.mulf %307, %305 : vector<4x4xf32>
    %309 = arith.addf %299, %308 : vector<4x4xf32>
    %c100 = arith.constant 100 : index
    %310 = memref.load %arg1[%c100] : memref<144xf32, #tpu.memory_space<smem>>
    %311 = vector.broadcast %310 : f32 to vector<4x4xf32>
    %312 = arith.mulf %311, %305 : vector<4x4xf32>
    %313 = arith.addf %303, %312 : vector<4x4xf32>
    %c0_129 = arith.constant 0 : index
    %c3_130 = arith.constant 3 : index
    %c0_131 = arith.constant 0 : index
    %c2_132 = arith.constant 2 : index
    %314 = vector.load %arg3[%c0_129, %c3_130, %c0_131, %c2_132] : memref<1x8x6x6xf32, #tpu.memory_space<vmem>>, vector<1x1x4x4xf32>
    %315 = vector.shape_cast %314 : vector<1x1x4x4xf32> to vector<4x4xf32>
    %c29 = arith.constant 29 : index
    %316 = memref.load %arg1[%c29] : memref<144xf32, #tpu.memory_space<smem>>
    %317 = vector.broadcast %316 : f32 to vector<4x4xf32>
    %318 = arith.mulf %317, %315 : vector<4x4xf32>
    %319 = arith.addf %309, %318 : vector<4x4xf32>
    %c101 = arith.constant 101 : index
    %320 = memref.load %arg1[%c101] : memref<144xf32, #tpu.memory_space<smem>>
    %321 = vector.broadcast %320 : f32 to vector<4x4xf32>
    %322 = arith.mulf %321, %315 : vector<4x4xf32>
    %323 = arith.addf %313, %322 : vector<4x4xf32>
    %c0_133 = arith.constant 0 : index
    %c3_134 = arith.constant 3 : index
    %c1_135 = arith.constant 1 : index
    %c0_136 = arith.constant 0 : index
    %324 = vector.load %arg3[%c0_133, %c3_134, %c1_135, %c0_136] : memref<1x8x6x6xf32, #tpu.memory_space<vmem>>, vector<1x1x4x4xf32>
    %325 = vector.shape_cast %324 : vector<1x1x4x4xf32> to vector<4x4xf32>
    %c30 = arith.constant 30 : index
    %326 = memref.load %arg1[%c30] : memref<144xf32, #tpu.memory_space<smem>>
    %327 = vector.broadcast %326 : f32 to vector<4x4xf32>
    %328 = arith.mulf %327, %325 : vector<4x4xf32>
    %329 = arith.addf %319, %328 : vector<4x4xf32>
    %c102 = arith.constant 102 : index
    %330 = memref.load %arg1[%c102] : memref<144xf32, #tpu.memory_space<smem>>
    %331 = vector.broadcast %330 : f32 to vector<4x4xf32>
    %332 = arith.mulf %331, %325 : vector<4x4xf32>
    %333 = arith.addf %323, %332 : vector<4x4xf32>
    %c0_137 = arith.constant 0 : index
    %c3_138 = arith.constant 3 : index
    %c1_139 = arith.constant 1 : index
    %c1_140 = arith.constant 1 : index
    %334 = vector.load %arg3[%c0_137, %c3_138, %c1_139, %c1_140] : memref<1x8x6x6xf32, #tpu.memory_space<vmem>>, vector<1x1x4x4xf32>
    %335 = vector.shape_cast %334 : vector<1x1x4x4xf32> to vector<4x4xf32>
    %c31 = arith.constant 31 : index
    %336 = memref.load %arg1[%c31] : memref<144xf32, #tpu.memory_space<smem>>
    %337 = vector.broadcast %336 : f32 to vector<4x4xf32>
    %338 = arith.mulf %337, %335 : vector<4x4xf32>
    %339 = arith.addf %329, %338 : vector<4x4xf32>
    %c103 = arith.constant 103 : index
    %340 = memref.load %arg1[%c103] : memref<144xf32, #tpu.memory_space<smem>>
    %341 = vector.broadcast %340 : f32 to vector<4x4xf32>
    %342 = arith.mulf %341, %335 : vector<4x4xf32>
    %343 = arith.addf %333, %342 : vector<4x4xf32>
    %c0_141 = arith.constant 0 : index
    %c3_142 = arith.constant 3 : index
    %c1_143 = arith.constant 1 : index
    %c2_144 = arith.constant 2 : index
    %344 = vector.load %arg3[%c0_141, %c3_142, %c1_143, %c2_144] : memref<1x8x6x6xf32, #tpu.memory_space<vmem>>, vector<1x1x4x4xf32>
    %345 = vector.shape_cast %344 : vector<1x1x4x4xf32> to vector<4x4xf32>
    %c32 = arith.constant 32 : index
    %346 = memref.load %arg1[%c32] : memref<144xf32, #tpu.memory_space<smem>>
    %347 = vector.broadcast %346 : f32 to vector<4x4xf32>
    %348 = arith.mulf %347, %345 : vector<4x4xf32>
    %349 = arith.addf %339, %348 : vector<4x4xf32>
    %c104 = arith.constant 104 : index
    %350 = memref.load %arg1[%c104] : memref<144xf32, #tpu.memory_space<smem>>
    %351 = vector.broadcast %350 : f32 to vector<4x4xf32>
    %352 = arith.mulf %351, %345 : vector<4x4xf32>
    %353 = arith.addf %343, %352 : vector<4x4xf32>
    %c0_145 = arith.constant 0 : index
    %c3_146 = arith.constant 3 : index
    %c2_147 = arith.constant 2 : index
    %c0_148 = arith.constant 0 : index
    %354 = vector.load %arg3[%c0_145, %c3_146, %c2_147, %c0_148] : memref<1x8x6x6xf32, #tpu.memory_space<vmem>>, vector<1x1x4x4xf32>
    %355 = vector.shape_cast %354 : vector<1x1x4x4xf32> to vector<4x4xf32>
    %c33 = arith.constant 33 : index
    %356 = memref.load %arg1[%c33] : memref<144xf32, #tpu.memory_space<smem>>
    %357 = vector.broadcast %356 : f32 to vector<4x4xf32>
    %358 = arith.mulf %357, %355 : vector<4x4xf32>
    %359 = arith.addf %349, %358 : vector<4x4xf32>
    %c105 = arith.constant 105 : index
    %360 = memref.load %arg1[%c105] : memref<144xf32, #tpu.memory_space<smem>>
    %361 = vector.broadcast %360 : f32 to vector<4x4xf32>
    %362 = arith.mulf %361, %355 : vector<4x4xf32>
    %363 = arith.addf %353, %362 : vector<4x4xf32>
    %c0_149 = arith.constant 0 : index
    %c3_150 = arith.constant 3 : index
    %c2_151 = arith.constant 2 : index
    %c1_152 = arith.constant 1 : index
    %364 = vector.load %arg3[%c0_149, %c3_150, %c2_151, %c1_152] : memref<1x8x6x6xf32, #tpu.memory_space<vmem>>, vector<1x1x4x4xf32>
    %365 = vector.shape_cast %364 : vector<1x1x4x4xf32> to vector<4x4xf32>
    %c34 = arith.constant 34 : index
    %366 = memref.load %arg1[%c34] : memref<144xf32, #tpu.memory_space<smem>>
    %367 = vector.broadcast %366 : f32 to vector<4x4xf32>
    %368 = arith.mulf %367, %365 : vector<4x4xf32>
    %369 = arith.addf %359, %368 : vector<4x4xf32>
    %c106 = arith.constant 106 : index
    %370 = memref.load %arg1[%c106] : memref<144xf32, #tpu.memory_space<smem>>
    %371 = vector.broadcast %370 : f32 to vector<4x4xf32>
    %372 = arith.mulf %371, %365 : vector<4x4xf32>
    %373 = arith.addf %363, %372 : vector<4x4xf32>
    %c0_153 = arith.constant 0 : index
    %c3_154 = arith.constant 3 : index
    %c2_155 = arith.constant 2 : index
    %c2_156 = arith.constant 2 : index
    %374 = vector.load %arg3[%c0_153, %c3_154, %c2_155, %c2_156] : memref<1x8x6x6xf32, #tpu.memory_space<vmem>>, vector<1x1x4x4xf32>
    %375 = vector.shape_cast %374 : vector<1x1x4x4xf32> to vector<4x4xf32>
    %c35 = arith.constant 35 : index
    %376 = memref.load %arg1[%c35] : memref<144xf32, #tpu.memory_space<smem>>
    %377 = vector.broadcast %376 : f32 to vector<4x4xf32>
    %378 = arith.mulf %377, %375 : vector<4x4xf32>
    %379 = arith.addf %369, %378 : vector<4x4xf32>
    %c107 = arith.constant 107 : index
    %380 = memref.load %arg1[%c107] : memref<144xf32, #tpu.memory_space<smem>>
    %381 = vector.broadcast %380 : f32 to vector<4x4xf32>
    %382 = arith.mulf %381, %375 : vector<4x4xf32>
    %383 = arith.addf %373, %382 : vector<4x4xf32>
    %c0_157 = arith.constant 0 : index
    %c4_158 = arith.constant 4 : index
    %c0_159 = arith.constant 0 : index
    %c0_160 = arith.constant 0 : index
    %384 = vector.load %arg3[%c0_157, %c4_158, %c0_159, %c0_160] : memref<1x8x6x6xf32, #tpu.memory_space<vmem>>, vector<1x1x4x4xf32>
    %385 = vector.shape_cast %384 : vector<1x1x4x4xf32> to vector<4x4xf32>
    %c36 = arith.constant 36 : index
    %386 = memref.load %arg1[%c36] : memref<144xf32, #tpu.memory_space<smem>>
    %387 = vector.broadcast %386 : f32 to vector<4x4xf32>
    %388 = arith.mulf %387, %385 : vector<4x4xf32>
    %389 = arith.addf %379, %388 : vector<4x4xf32>
    %c108 = arith.constant 108 : index
    %390 = memref.load %arg1[%c108] : memref<144xf32, #tpu.memory_space<smem>>
    %391 = vector.broadcast %390 : f32 to vector<4x4xf32>
    %392 = arith.mulf %391, %385 : vector<4x4xf32>
    %393 = arith.addf %383, %392 : vector<4x4xf32>
    %c0_161 = arith.constant 0 : index
    %c4_162 = arith.constant 4 : index
    %c0_163 = arith.constant 0 : index
    %c1_164 = arith.constant 1 : index
    %394 = vector.load %arg3[%c0_161, %c4_162, %c0_163, %c1_164] : memref<1x8x6x6xf32, #tpu.memory_space<vmem>>, vector<1x1x4x4xf32>
    %395 = vector.shape_cast %394 : vector<1x1x4x4xf32> to vector<4x4xf32>
    %c37 = arith.constant 37 : index
    %396 = memref.load %arg1[%c37] : memref<144xf32, #tpu.memory_space<smem>>
    %397 = vector.broadcast %396 : f32 to vector<4x4xf32>
    %398 = arith.mulf %397, %395 : vector<4x4xf32>
    %399 = arith.addf %389, %398 : vector<4x4xf32>
    %c109 = arith.constant 109 : index
    %400 = memref.load %arg1[%c109] : memref<144xf32, #tpu.memory_space<smem>>
    %401 = vector.broadcast %400 : f32 to vector<4x4xf32>
    %402 = arith.mulf %401, %395 : vector<4x4xf32>
    %403 = arith.addf %393, %402 : vector<4x4xf32>
    %c0_165 = arith.constant 0 : index
    %c4_166 = arith.constant 4 : index
    %c0_167 = arith.constant 0 : index
    %c2_168 = arith.constant 2 : index
    %404 = vector.load %arg3[%c0_165, %c4_166, %c0_167, %c2_168] : memref<1x8x6x6xf32, #tpu.memory_space<vmem>>, vector<1x1x4x4xf32>
    %405 = vector.shape_cast %404 : vector<1x1x4x4xf32> to vector<4x4xf32>
    %c38 = arith.constant 38 : index
    %406 = memref.load %arg1[%c38] : memref<144xf32, #tpu.memory_space<smem>>
    %407 = vector.broadcast %406 : f32 to vector<4x4xf32>
    %408 = arith.mulf %407, %405 : vector<4x4xf32>
    %409 = arith.addf %399, %408 : vector<4x4xf32>
    %c110 = arith.constant 110 : index
    %410 = memref.load %arg1[%c110] : memref<144xf32, #tpu.memory_space<smem>>
    %411 = vector.broadcast %410 : f32 to vector<4x4xf32>
    %412 = arith.mulf %411, %405 : vector<4x4xf32>
    %413 = arith.addf %403, %412 : vector<4x4xf32>
    %c0_169 = arith.constant 0 : index
    %c4_170 = arith.constant 4 : index
    %c1_171 = arith.constant 1 : index
    %c0_172 = arith.constant 0 : index
    %414 = vector.load %arg3[%c0_169, %c4_170, %c1_171, %c0_172] : memref<1x8x6x6xf32, #tpu.memory_space<vmem>>, vector<1x1x4x4xf32>
    %415 = vector.shape_cast %414 : vector<1x1x4x4xf32> to vector<4x4xf32>
    %c39 = arith.constant 39 : index
    %416 = memref.load %arg1[%c39] : memref<144xf32, #tpu.memory_space<smem>>
    %417 = vector.broadcast %416 : f32 to vector<4x4xf32>
    %418 = arith.mulf %417, %415 : vector<4x4xf32>
    %419 = arith.addf %409, %418 : vector<4x4xf32>
    %c111 = arith.constant 111 : index
    %420 = memref.load %arg1[%c111] : memref<144xf32, #tpu.memory_space<smem>>
    %421 = vector.broadcast %420 : f32 to vector<4x4xf32>
    %422 = arith.mulf %421, %415 : vector<4x4xf32>
    %423 = arith.addf %413, %422 : vector<4x4xf32>
    %c0_173 = arith.constant 0 : index
    %c4_174 = arith.constant 4 : index
    %c1_175 = arith.constant 1 : index
    %c1_176 = arith.constant 1 : index
    %424 = vector.load %arg3[%c0_173, %c4_174, %c1_175, %c1_176] : memref<1x8x6x6xf32, #tpu.memory_space<vmem>>, vector<1x1x4x4xf32>
    %425 = vector.shape_cast %424 : vector<1x1x4x4xf32> to vector<4x4xf32>
    %c40 = arith.constant 40 : index
    %426 = memref.load %arg1[%c40] : memref<144xf32, #tpu.memory_space<smem>>
    %427 = vector.broadcast %426 : f32 to vector<4x4xf32>
    %428 = arith.mulf %427, %425 : vector<4x4xf32>
    %429 = arith.addf %419, %428 : vector<4x4xf32>
    %c112 = arith.constant 112 : index
    %430 = memref.load %arg1[%c112] : memref<144xf32, #tpu.memory_space<smem>>
    %431 = vector.broadcast %430 : f32 to vector<4x4xf32>
    %432 = arith.mulf %431, %425 : vector<4x4xf32>
    %433 = arith.addf %423, %432 : vector<4x4xf32>
    %c0_177 = arith.constant 0 : index
    %c4_178 = arith.constant 4 : index
    %c1_179 = arith.constant 1 : index
    %c2_180 = arith.constant 2 : index
    %434 = vector.load %arg3[%c0_177, %c4_178, %c1_179, %c2_180] : memref<1x8x6x6xf32, #tpu.memory_space<vmem>>, vector<1x1x4x4xf32>
    %435 = vector.shape_cast %434 : vector<1x1x4x4xf32> to vector<4x4xf32>
    %c41 = arith.constant 41 : index
    %436 = memref.load %arg1[%c41] : memref<144xf32, #tpu.memory_space<smem>>
    %437 = vector.broadcast %436 : f32 to vector<4x4xf32>
    %438 = arith.mulf %437, %435 : vector<4x4xf32>
    %439 = arith.addf %429, %438 : vector<4x4xf32>
    %c113 = arith.constant 113 : index
    %440 = memref.load %arg1[%c113] : memref<144xf32, #tpu.memory_space<smem>>
    %441 = vector.broadcast %440 : f32 to vector<4x4xf32>
    %442 = arith.mulf %441, %435 : vector<4x4xf32>
    %443 = arith.addf %433, %442 : vector<4x4xf32>
    %c0_181 = arith.constant 0 : index
    %c4_182 = arith.constant 4 : index
    %c2_183 = arith.constant 2 : index
    %c0_184 = arith.constant 0 : index
    %444 = vector.load %arg3[%c0_181, %c4_182, %c2_183, %c0_184] : memref<1x8x6x6xf32, #tpu.memory_space<vmem>>, vector<1x1x4x4xf32>
    %445 = vector.shape_cast %444 : vector<1x1x4x4xf32> to vector<4x4xf32>
    %c42 = arith.constant 42 : index
    %446 = memref.load %arg1[%c42] : memref<144xf32, #tpu.memory_space<smem>>
    %447 = vector.broadcast %446 : f32 to vector<4x4xf32>
    %448 = arith.mulf %447, %445 : vector<4x4xf32>
    %449 = arith.addf %439, %448 : vector<4x4xf32>
    %c114 = arith.constant 114 : index
    %450 = memref.load %arg1[%c114] : memref<144xf32, #tpu.memory_space<smem>>
    %451 = vector.broadcast %450 : f32 to vector<4x4xf32>
    %452 = arith.mulf %451, %445 : vector<4x4xf32>
    %453 = arith.addf %443, %452 : vector<4x4xf32>
    %c0_185 = arith.constant 0 : index
    %c4_186 = arith.constant 4 : index
    %c2_187 = arith.constant 2 : index
    %c1_188 = arith.constant 1 : index
    %454 = vector.load %arg3[%c0_185, %c4_186, %c2_187, %c1_188] : memref<1x8x6x6xf32, #tpu.memory_space<vmem>>, vector<1x1x4x4xf32>
    %455 = vector.shape_cast %454 : vector<1x1x4x4xf32> to vector<4x4xf32>
    %c43 = arith.constant 43 : index
    %456 = memref.load %arg1[%c43] : memref<144xf32, #tpu.memory_space<smem>>
    %457 = vector.broadcast %456 : f32 to vector<4x4xf32>
    %458 = arith.mulf %457, %455 : vector<4x4xf32>
    %459 = arith.addf %449, %458 : vector<4x4xf32>
    %c115 = arith.constant 115 : index
    %460 = memref.load %arg1[%c115] : memref<144xf32, #tpu.memory_space<smem>>
    %461 = vector.broadcast %460 : f32 to vector<4x4xf32>
    %462 = arith.mulf %461, %455 : vector<4x4xf32>
    %463 = arith.addf %453, %462 : vector<4x4xf32>
    %c0_189 = arith.constant 0 : index
    %c4_190 = arith.constant 4 : index
    %c2_191 = arith.constant 2 : index
    %c2_192 = arith.constant 2 : index
    %464 = vector.load %arg3[%c0_189, %c4_190, %c2_191, %c2_192] : memref<1x8x6x6xf32, #tpu.memory_space<vmem>>, vector<1x1x4x4xf32>
    %465 = vector.shape_cast %464 : vector<1x1x4x4xf32> to vector<4x4xf32>
    %c44 = arith.constant 44 : index
    %466 = memref.load %arg1[%c44] : memref<144xf32, #tpu.memory_space<smem>>
    %467 = vector.broadcast %466 : f32 to vector<4x4xf32>
    %468 = arith.mulf %467, %465 : vector<4x4xf32>
    %469 = arith.addf %459, %468 : vector<4x4xf32>
    %c116 = arith.constant 116 : index
    %470 = memref.load %arg1[%c116] : memref<144xf32, #tpu.memory_space<smem>>
    %471 = vector.broadcast %470 : f32 to vector<4x4xf32>
    %472 = arith.mulf %471, %465 : vector<4x4xf32>
    %473 = arith.addf %463, %472 : vector<4x4xf32>
    %c0_193 = arith.constant 0 : index
    %c5_194 = arith.constant 5 : index
    %c0_195 = arith.constant 0 : index
    %c0_196 = arith.constant 0 : index
    %474 = vector.load %arg3[%c0_193, %c5_194, %c0_195, %c0_196] : memref<1x8x6x6xf32, #tpu.memory_space<vmem>>, vector<1x1x4x4xf32>
    %475 = vector.shape_cast %474 : vector<1x1x4x4xf32> to vector<4x4xf32>
    %c45 = arith.constant 45 : index
    %476 = memref.load %arg1[%c45] : memref<144xf32, #tpu.memory_space<smem>>
    %477 = vector.broadcast %476 : f32 to vector<4x4xf32>
    %478 = arith.mulf %477, %475 : vector<4x4xf32>
    %479 = arith.addf %469, %478 : vector<4x4xf32>
    %c117 = arith.constant 117 : index
    %480 = memref.load %arg1[%c117] : memref<144xf32, #tpu.memory_space<smem>>
    %481 = vector.broadcast %480 : f32 to vector<4x4xf32>
    %482 = arith.mulf %481, %475 : vector<4x4xf32>
    %483 = arith.addf %473, %482 : vector<4x4xf32>
    %c0_197 = arith.constant 0 : index
    %c5_198 = arith.constant 5 : index
    %c0_199 = arith.constant 0 : index
    %c1_200 = arith.constant 1 : index
    %484 = vector.load %arg3[%c0_197, %c5_198, %c0_199, %c1_200] : memref<1x8x6x6xf32, #tpu.memory_space<vmem>>, vector<1x1x4x4xf32>
    %485 = vector.shape_cast %484 : vector<1x1x4x4xf32> to vector<4x4xf32>
    %c46 = arith.constant 46 : index
    %486 = memref.load %arg1[%c46] : memref<144xf32, #tpu.memory_space<smem>>
    %487 = vector.broadcast %486 : f32 to vector<4x4xf32>
    %488 = arith.mulf %487, %485 : vector<4x4xf32>
    %489 = arith.addf %479, %488 : vector<4x4xf32>
    %c118 = arith.constant 118 : index
    %490 = memref.load %arg1[%c118] : memref<144xf32, #tpu.memory_space<smem>>
    %491 = vector.broadcast %490 : f32 to vector<4x4xf32>
    %492 = arith.mulf %491, %485 : vector<4x4xf32>
    %493 = arith.addf %483, %492 : vector<4x4xf32>
    %c0_201 = arith.constant 0 : index
    %c5_202 = arith.constant 5 : index
    %c0_203 = arith.constant 0 : index
    %c2_204 = arith.constant 2 : index
    %494 = vector.load %arg3[%c0_201, %c5_202, %c0_203, %c2_204] : memref<1x8x6x6xf32, #tpu.memory_space<vmem>>, vector<1x1x4x4xf32>
    %495 = vector.shape_cast %494 : vector<1x1x4x4xf32> to vector<4x4xf32>
    %c47 = arith.constant 47 : index
    %496 = memref.load %arg1[%c47] : memref<144xf32, #tpu.memory_space<smem>>
    %497 = vector.broadcast %496 : f32 to vector<4x4xf32>
    %498 = arith.mulf %497, %495 : vector<4x4xf32>
    %499 = arith.addf %489, %498 : vector<4x4xf32>
    %c119 = arith.constant 119 : index
    %500 = memref.load %arg1[%c119] : memref<144xf32, #tpu.memory_space<smem>>
    %501 = vector.broadcast %500 : f32 to vector<4x4xf32>
    %502 = arith.mulf %501, %495 : vector<4x4xf32>
    %503 = arith.addf %493, %502 : vector<4x4xf32>
    %c0_205 = arith.constant 0 : index
    %c5_206 = arith.constant 5 : index
    %c1_207 = arith.constant 1 : index
    %c0_208 = arith.constant 0 : index
    %504 = vector.load %arg3[%c0_205, %c5_206, %c1_207, %c0_208] : memref<1x8x6x6xf32, #tpu.memory_space<vmem>>, vector<1x1x4x4xf32>
    %505 = vector.shape_cast %504 : vector<1x1x4x4xf32> to vector<4x4xf32>
    %c48 = arith.constant 48 : index
    %506 = memref.load %arg1[%c48] : memref<144xf32, #tpu.memory_space<smem>>
    %507 = vector.broadcast %506 : f32 to vector<4x4xf32>
    %508 = arith.mulf %507, %505 : vector<4x4xf32>
    %509 = arith.addf %499, %508 : vector<4x4xf32>
    %c120 = arith.constant 120 : index
    %510 = memref.load %arg1[%c120] : memref<144xf32, #tpu.memory_space<smem>>
    %511 = vector.broadcast %510 : f32 to vector<4x4xf32>
    %512 = arith.mulf %511, %505 : vector<4x4xf32>
    %513 = arith.addf %503, %512 : vector<4x4xf32>
    %c0_209 = arith.constant 0 : index
    %c5_210 = arith.constant 5 : index
    %c1_211 = arith.constant 1 : index
    %c1_212 = arith.constant 1 : index
    %514 = vector.load %arg3[%c0_209, %c5_210, %c1_211, %c1_212] : memref<1x8x6x6xf32, #tpu.memory_space<vmem>>, vector<1x1x4x4xf32>
    %515 = vector.shape_cast %514 : vector<1x1x4x4xf32> to vector<4x4xf32>
    %c49 = arith.constant 49 : index
    %516 = memref.load %arg1[%c49] : memref<144xf32, #tpu.memory_space<smem>>
    %517 = vector.broadcast %516 : f32 to vector<4x4xf32>
    %518 = arith.mulf %517, %515 : vector<4x4xf32>
    %519 = arith.addf %509, %518 : vector<4x4xf32>
    %c121 = arith.constant 121 : index
    %520 = memref.load %arg1[%c121] : memref<144xf32, #tpu.memory_space<smem>>
    %521 = vector.broadcast %520 : f32 to vector<4x4xf32>
    %522 = arith.mulf %521, %515 : vector<4x4xf32>
    %523 = arith.addf %513, %522 : vector<4x4xf32>
    %c0_213 = arith.constant 0 : index
    %c5_214 = arith.constant 5 : index
    %c1_215 = arith.constant 1 : index
    %c2_216 = arith.constant 2 : index
    %524 = vector.load %arg3[%c0_213, %c5_214, %c1_215, %c2_216] : memref<1x8x6x6xf32, #tpu.memory_space<vmem>>, vector<1x1x4x4xf32>
    %525 = vector.shape_cast %524 : vector<1x1x4x4xf32> to vector<4x4xf32>
    %c50 = arith.constant 50 : index
    %526 = memref.load %arg1[%c50] : memref<144xf32, #tpu.memory_space<smem>>
    %527 = vector.broadcast %526 : f32 to vector<4x4xf32>
    %528 = arith.mulf %527, %525 : vector<4x4xf32>
    %529 = arith.addf %519, %528 : vector<4x4xf32>
    %c122 = arith.constant 122 : index
    %530 = memref.load %arg1[%c122] : memref<144xf32, #tpu.memory_space<smem>>
    %531 = vector.broadcast %530 : f32 to vector<4x4xf32>
    %532 = arith.mulf %531, %525 : vector<4x4xf32>
    %533 = arith.addf %523, %532 : vector<4x4xf32>
    %c0_217 = arith.constant 0 : index
    %c5_218 = arith.constant 5 : index
    %c2_219 = arith.constant 2 : index
    %c0_220 = arith.constant 0 : index
    %534 = vector.load %arg3[%c0_217, %c5_218, %c2_219, %c0_220] : memref<1x8x6x6xf32, #tpu.memory_space<vmem>>, vector<1x1x4x4xf32>
    %535 = vector.shape_cast %534 : vector<1x1x4x4xf32> to vector<4x4xf32>
    %c51 = arith.constant 51 : index
    %536 = memref.load %arg1[%c51] : memref<144xf32, #tpu.memory_space<smem>>
    %537 = vector.broadcast %536 : f32 to vector<4x4xf32>
    %538 = arith.mulf %537, %535 : vector<4x4xf32>
    %539 = arith.addf %529, %538 : vector<4x4xf32>
    %c123 = arith.constant 123 : index
    %540 = memref.load %arg1[%c123] : memref<144xf32, #tpu.memory_space<smem>>
    %541 = vector.broadcast %540 : f32 to vector<4x4xf32>
    %542 = arith.mulf %541, %535 : vector<4x4xf32>
    %543 = arith.addf %533, %542 : vector<4x4xf32>
    %c0_221 = arith.constant 0 : index
    %c5_222 = arith.constant 5 : index
    %c2_223 = arith.constant 2 : index
    %c1_224 = arith.constant 1 : index
    %544 = vector.load %arg3[%c0_221, %c5_222, %c2_223, %c1_224] : memref<1x8x6x6xf32, #tpu.memory_space<vmem>>, vector<1x1x4x4xf32>
    %545 = vector.shape_cast %544 : vector<1x1x4x4xf32> to vector<4x4xf32>
    %c52 = arith.constant 52 : index
    %546 = memref.load %arg1[%c52] : memref<144xf32, #tpu.memory_space<smem>>
    %547 = vector.broadcast %546 : f32 to vector<4x4xf32>
    %548 = arith.mulf %547, %545 : vector<4x4xf32>
    %549 = arith.addf %539, %548 : vector<4x4xf32>
    %c124 = arith.constant 124 : index
    %550 = memref.load %arg1[%c124] : memref<144xf32, #tpu.memory_space<smem>>
    %551 = vector.broadcast %550 : f32 to vector<4x4xf32>
    %552 = arith.mulf %551, %545 : vector<4x4xf32>
    %553 = arith.addf %543, %552 : vector<4x4xf32>
    %c0_225 = arith.constant 0 : index
    %c5_226 = arith.constant 5 : index
    %c2_227 = arith.constant 2 : index
    %c2_228 = arith.constant 2 : index
    %554 = vector.load %arg3[%c0_225, %c5_226, %c2_227, %c2_228] : memref<1x8x6x6xf32, #tpu.memory_space<vmem>>, vector<1x1x4x4xf32>
    %555 = vector.shape_cast %554 : vector<1x1x4x4xf32> to vector<4x4xf32>
    %c53 = arith.constant 53 : index
    %556 = memref.load %arg1[%c53] : memref<144xf32, #tpu.memory_space<smem>>
    %557 = vector.broadcast %556 : f32 to vector<4x4xf32>
    %558 = arith.mulf %557, %555 : vector<4x4xf32>
    %559 = arith.addf %549, %558 : vector<4x4xf32>
    %c125 = arith.constant 125 : index
    %560 = memref.load %arg1[%c125] : memref<144xf32, #tpu.memory_space<smem>>
    %561 = vector.broadcast %560 : f32 to vector<4x4xf32>
    %562 = arith.mulf %561, %555 : vector<4x4xf32>
    %563 = arith.addf %553, %562 : vector<4x4xf32>
    %c0_229 = arith.constant 0 : index
    %c6_230 = arith.constant 6 : index
    %c0_231 = arith.constant 0 : index
    %c0_232 = arith.constant 0 : index
    %564 = vector.load %arg3[%c0_229, %c6_230, %c0_231, %c0_232] : memref<1x8x6x6xf32, #tpu.memory_space<vmem>>, vector<1x1x4x4xf32>
    %565 = vector.shape_cast %564 : vector<1x1x4x4xf32> to vector<4x4xf32>
    %c54 = arith.constant 54 : index
    %566 = memref.load %arg1[%c54] : memref<144xf32, #tpu.memory_space<smem>>
    %567 = vector.broadcast %566 : f32 to vector<4x4xf32>
    %568 = arith.mulf %567, %565 : vector<4x4xf32>
    %569 = arith.addf %559, %568 : vector<4x4xf32>
    %c126 = arith.constant 126 : index
    %570 = memref.load %arg1[%c126] : memref<144xf32, #tpu.memory_space<smem>>
    %571 = vector.broadcast %570 : f32 to vector<4x4xf32>
    %572 = arith.mulf %571, %565 : vector<4x4xf32>
    %573 = arith.addf %563, %572 : vector<4x4xf32>
    %c0_233 = arith.constant 0 : index
    %c6_234 = arith.constant 6 : index
    %c0_235 = arith.constant 0 : index
    %c1_236 = arith.constant 1 : index
    %574 = vector.load %arg3[%c0_233, %c6_234, %c0_235, %c1_236] : memref<1x8x6x6xf32, #tpu.memory_space<vmem>>, vector<1x1x4x4xf32>
    %575 = vector.shape_cast %574 : vector<1x1x4x4xf32> to vector<4x4xf32>
    %c55 = arith.constant 55 : index
    %576 = memref.load %arg1[%c55] : memref<144xf32, #tpu.memory_space<smem>>
    %577 = vector.broadcast %576 : f32 to vector<4x4xf32>
    %578 = arith.mulf %577, %575 : vector<4x4xf32>
    %579 = arith.addf %569, %578 : vector<4x4xf32>
    %c127 = arith.constant 127 : index
    %580 = memref.load %arg1[%c127] : memref<144xf32, #tpu.memory_space<smem>>
    %581 = vector.broadcast %580 : f32 to vector<4x4xf32>
    %582 = arith.mulf %581, %575 : vector<4x4xf32>
    %583 = arith.addf %573, %582 : vector<4x4xf32>
    %c0_237 = arith.constant 0 : index
    %c6_238 = arith.constant 6 : index
    %c0_239 = arith.constant 0 : index
    %c2_240 = arith.constant 2 : index
    %584 = vector.load %arg3[%c0_237, %c6_238, %c0_239, %c2_240] : memref<1x8x6x6xf32, #tpu.memory_space<vmem>>, vector<1x1x4x4xf32>
    %585 = vector.shape_cast %584 : vector<1x1x4x4xf32> to vector<4x4xf32>
    %c56 = arith.constant 56 : index
    %586 = memref.load %arg1[%c56] : memref<144xf32, #tpu.memory_space<smem>>
    %587 = vector.broadcast %586 : f32 to vector<4x4xf32>
    %588 = arith.mulf %587, %585 : vector<4x4xf32>
    %589 = arith.addf %579, %588 : vector<4x4xf32>
    %c128 = arith.constant 128 : index
    %590 = memref.load %arg1[%c128] : memref<144xf32, #tpu.memory_space<smem>>
    %591 = vector.broadcast %590 : f32 to vector<4x4xf32>
    %592 = arith.mulf %591, %585 : vector<4x4xf32>
    %593 = arith.addf %583, %592 : vector<4x4xf32>
    %c0_241 = arith.constant 0 : index
    %c6_242 = arith.constant 6 : index
    %c1_243 = arith.constant 1 : index
    %c0_244 = arith.constant 0 : index
    %594 = vector.load %arg3[%c0_241, %c6_242, %c1_243, %c0_244] : memref<1x8x6x6xf32, #tpu.memory_space<vmem>>, vector<1x1x4x4xf32>
    %595 = vector.shape_cast %594 : vector<1x1x4x4xf32> to vector<4x4xf32>
    %c57 = arith.constant 57 : index
    %596 = memref.load %arg1[%c57] : memref<144xf32, #tpu.memory_space<smem>>
    %597 = vector.broadcast %596 : f32 to vector<4x4xf32>
    %598 = arith.mulf %597, %595 : vector<4x4xf32>
    %599 = arith.addf %589, %598 : vector<4x4xf32>
    %c129 = arith.constant 129 : index
    %600 = memref.load %arg1[%c129] : memref<144xf32, #tpu.memory_space<smem>>
    %601 = vector.broadcast %600 : f32 to vector<4x4xf32>
    %602 = arith.mulf %601, %595 : vector<4x4xf32>
    %603 = arith.addf %593, %602 : vector<4x4xf32>
    %c0_245 = arith.constant 0 : index
    %c6_246 = arith.constant 6 : index
    %c1_247 = arith.constant 1 : index
    %c1_248 = arith.constant 1 : index
    %604 = vector.load %arg3[%c0_245, %c6_246, %c1_247, %c1_248] : memref<1x8x6x6xf32, #tpu.memory_space<vmem>>, vector<1x1x4x4xf32>
    %605 = vector.shape_cast %604 : vector<1x1x4x4xf32> to vector<4x4xf32>
    %c58 = arith.constant 58 : index
    %606 = memref.load %arg1[%c58] : memref<144xf32, #tpu.memory_space<smem>>
    %607 = vector.broadcast %606 : f32 to vector<4x4xf32>
    %608 = arith.mulf %607, %605 : vector<4x4xf32>
    %609 = arith.addf %599, %608 : vector<4x4xf32>
    %c130 = arith.constant 130 : index
    %610 = memref.load %arg1[%c130] : memref<144xf32, #tpu.memory_space<smem>>
    %611 = vector.broadcast %610 : f32 to vector<4x4xf32>
    %612 = arith.mulf %611, %605 : vector<4x4xf32>
    %613 = arith.addf %603, %612 : vector<4x4xf32>
    %c0_249 = arith.constant 0 : index
    %c6_250 = arith.constant 6 : index
    %c1_251 = arith.constant 1 : index
    %c2_252 = arith.constant 2 : index
    %614 = vector.load %arg3[%c0_249, %c6_250, %c1_251, %c2_252] : memref<1x8x6x6xf32, #tpu.memory_space<vmem>>, vector<1x1x4x4xf32>
    %615 = vector.shape_cast %614 : vector<1x1x4x4xf32> to vector<4x4xf32>
    %c59 = arith.constant 59 : index
    %616 = memref.load %arg1[%c59] : memref<144xf32, #tpu.memory_space<smem>>
    %617 = vector.broadcast %616 : f32 to vector<4x4xf32>
    %618 = arith.mulf %617, %615 : vector<4x4xf32>
    %619 = arith.addf %609, %618 : vector<4x4xf32>
    %c131 = arith.constant 131 : index
    %620 = memref.load %arg1[%c131] : memref<144xf32, #tpu.memory_space<smem>>
    %621 = vector.broadcast %620 : f32 to vector<4x4xf32>
    %622 = arith.mulf %621, %615 : vector<4x4xf32>
    %623 = arith.addf %613, %622 : vector<4x4xf32>
    %c0_253 = arith.constant 0 : index
    %c6_254 = arith.constant 6 : index
    %c2_255 = arith.constant 2 : index
    %c0_256 = arith.constant 0 : index
    %624 = vector.load %arg3[%c0_253, %c6_254, %c2_255, %c0_256] : memref<1x8x6x6xf32, #tpu.memory_space<vmem>>, vector<1x1x4x4xf32>
    %625 = vector.shape_cast %624 : vector<1x1x4x4xf32> to vector<4x4xf32>
    %c60 = arith.constant 60 : index
    %626 = memref.load %arg1[%c60] : memref<144xf32, #tpu.memory_space<smem>>
    %627 = vector.broadcast %626 : f32 to vector<4x4xf32>
    %628 = arith.mulf %627, %625 : vector<4x4xf32>
    %629 = arith.addf %619, %628 : vector<4x4xf32>
    %c132 = arith.constant 132 : index
    %630 = memref.load %arg1[%c132] : memref<144xf32, #tpu.memory_space<smem>>
    %631 = vector.broadcast %630 : f32 to vector<4x4xf32>
    %632 = arith.mulf %631, %625 : vector<4x4xf32>
    %633 = arith.addf %623, %632 : vector<4x4xf32>
    %c0_257 = arith.constant 0 : index
    %c6_258 = arith.constant 6 : index
    %c2_259 = arith.constant 2 : index
    %c1_260 = arith.constant 1 : index
    %634 = vector.load %arg3[%c0_257, %c6_258, %c2_259, %c1_260] : memref<1x8x6x6xf32, #tpu.memory_space<vmem>>, vector<1x1x4x4xf32>
    %635 = vector.shape_cast %634 : vector<1x1x4x4xf32> to vector<4x4xf32>
    %c61 = arith.constant 61 : index
    %636 = memref.load %arg1[%c61] : memref<144xf32, #tpu.memory_space<smem>>
    %637 = vector.broadcast %636 : f32 to vector<4x4xf32>
    %638 = arith.mulf %637, %635 : vector<4x4xf32>
    %639 = arith.addf %629, %638 : vector<4x4xf32>
    %c133 = arith.constant 133 : index
    %640 = memref.load %arg1[%c133] : memref<144xf32, #tpu.memory_space<smem>>
    %641 = vector.broadcast %640 : f32 to vector<4x4xf32>
    %642 = arith.mulf %641, %635 : vector<4x4xf32>
    %643 = arith.addf %633, %642 : vector<4x4xf32>
    %c0_261 = arith.constant 0 : index
    %c6_262 = arith.constant 6 : index
    %c2_263 = arith.constant 2 : index
    %c2_264 = arith.constant 2 : index
    %644 = vector.load %arg3[%c0_261, %c6_262, %c2_263, %c2_264] : memref<1x8x6x6xf32, #tpu.memory_space<vmem>>, vector<1x1x4x4xf32>
    %645 = vector.shape_cast %644 : vector<1x1x4x4xf32> to vector<4x4xf32>
    %c62 = arith.constant 62 : index
    %646 = memref.load %arg1[%c62] : memref<144xf32, #tpu.memory_space<smem>>
    %647 = vector.broadcast %646 : f32 to vector<4x4xf32>
    %648 = arith.mulf %647, %645 : vector<4x4xf32>
    %649 = arith.addf %639, %648 : vector<4x4xf32>
    %c134 = arith.constant 134 : index
    %650 = memref.load %arg1[%c134] : memref<144xf32, #tpu.memory_space<smem>>
    %651 = vector.broadcast %650 : f32 to vector<4x4xf32>
    %652 = arith.mulf %651, %645 : vector<4x4xf32>
    %653 = arith.addf %643, %652 : vector<4x4xf32>
    %c0_265 = arith.constant 0 : index
    %c7_266 = arith.constant 7 : index
    %c0_267 = arith.constant 0 : index
    %c0_268 = arith.constant 0 : index
    %654 = vector.load %arg3[%c0_265, %c7_266, %c0_267, %c0_268] : memref<1x8x6x6xf32, #tpu.memory_space<vmem>>, vector<1x1x4x4xf32>
    %655 = vector.shape_cast %654 : vector<1x1x4x4xf32> to vector<4x4xf32>
    %c63 = arith.constant 63 : index
    %656 = memref.load %arg1[%c63] : memref<144xf32, #tpu.memory_space<smem>>
    %657 = vector.broadcast %656 : f32 to vector<4x4xf32>
    %658 = arith.mulf %657, %655 : vector<4x4xf32>
    %659 = arith.addf %649, %658 : vector<4x4xf32>
    %c135 = arith.constant 135 : index
    %660 = memref.load %arg1[%c135] : memref<144xf32, #tpu.memory_space<smem>>
    %661 = vector.broadcast %660 : f32 to vector<4x4xf32>
    %662 = arith.mulf %661, %655 : vector<4x4xf32>
    %663 = arith.addf %653, %662 : vector<4x4xf32>
    %c0_269 = arith.constant 0 : index
    %c7_270 = arith.constant 7 : index
    %c0_271 = arith.constant 0 : index
    %c1_272 = arith.constant 1 : index
    %664 = vector.load %arg3[%c0_269, %c7_270, %c0_271, %c1_272] : memref<1x8x6x6xf32, #tpu.memory_space<vmem>>, vector<1x1x4x4xf32>
    %665 = vector.shape_cast %664 : vector<1x1x4x4xf32> to vector<4x4xf32>
    %c64 = arith.constant 64 : index
    %666 = memref.load %arg1[%c64] : memref<144xf32, #tpu.memory_space<smem>>
    %667 = vector.broadcast %666 : f32 to vector<4x4xf32>
    %668 = arith.mulf %667, %665 : vector<4x4xf32>
    %669 = arith.addf %659, %668 : vector<4x4xf32>
    %c136 = arith.constant 136 : index
    %670 = memref.load %arg1[%c136] : memref<144xf32, #tpu.memory_space<smem>>
    %671 = vector.broadcast %670 : f32 to vector<4x4xf32>
    %672 = arith.mulf %671, %665 : vector<4x4xf32>
    %673 = arith.addf %663, %672 : vector<4x4xf32>
    %c0_273 = arith.constant 0 : index
    %c7_274 = arith.constant 7 : index
    %c0_275 = arith.constant 0 : index
    %c2_276 = arith.constant 2 : index
    %674 = vector.load %arg3[%c0_273, %c7_274, %c0_275, %c2_276] : memref<1x8x6x6xf32, #tpu.memory_space<vmem>>, vector<1x1x4x4xf32>
    %675 = vector.shape_cast %674 : vector<1x1x4x4xf32> to vector<4x4xf32>
    %c65 = arith.constant 65 : index
    %676 = memref.load %arg1[%c65] : memref<144xf32, #tpu.memory_space<smem>>
    %677 = vector.broadcast %676 : f32 to vector<4x4xf32>
    %678 = arith.mulf %677, %675 : vector<4x4xf32>
    %679 = arith.addf %669, %678 : vector<4x4xf32>
    %c137 = arith.constant 137 : index
    %680 = memref.load %arg1[%c137] : memref<144xf32, #tpu.memory_space<smem>>
    %681 = vector.broadcast %680 : f32 to vector<4x4xf32>
    %682 = arith.mulf %681, %675 : vector<4x4xf32>
    %683 = arith.addf %673, %682 : vector<4x4xf32>
    %c0_277 = arith.constant 0 : index
    %c7_278 = arith.constant 7 : index
    %c1_279 = arith.constant 1 : index
    %c0_280 = arith.constant 0 : index
    %684 = vector.load %arg3[%c0_277, %c7_278, %c1_279, %c0_280] : memref<1x8x6x6xf32, #tpu.memory_space<vmem>>, vector<1x1x4x4xf32>
    %685 = vector.shape_cast %684 : vector<1x1x4x4xf32> to vector<4x4xf32>
    %c66 = arith.constant 66 : index
    %686 = memref.load %arg1[%c66] : memref<144xf32, #tpu.memory_space<smem>>
    %687 = vector.broadcast %686 : f32 to vector<4x4xf32>
    %688 = arith.mulf %687, %685 : vector<4x4xf32>
    %689 = arith.addf %679, %688 : vector<4x4xf32>
    %c138 = arith.constant 138 : index
    %690 = memref.load %arg1[%c138] : memref<144xf32, #tpu.memory_space<smem>>
    %691 = vector.broadcast %690 : f32 to vector<4x4xf32>
    %692 = arith.mulf %691, %685 : vector<4x4xf32>
    %693 = arith.addf %683, %692 : vector<4x4xf32>
    %c0_281 = arith.constant 0 : index
    %c7_282 = arith.constant 7 : index
    %c1_283 = arith.constant 1 : index
    %c1_284 = arith.constant 1 : index
    %694 = vector.load %arg3[%c0_281, %c7_282, %c1_283, %c1_284] : memref<1x8x6x6xf32, #tpu.memory_space<vmem>>, vector<1x1x4x4xf32>
    %695 = vector.shape_cast %694 : vector<1x1x4x4xf32> to vector<4x4xf32>
    %c67 = arith.constant 67 : index
    %696 = memref.load %arg1[%c67] : memref<144xf32, #tpu.memory_space<smem>>
    %697 = vector.broadcast %696 : f32 to vector<4x4xf32>
    %698 = arith.mulf %697, %695 : vector<4x4xf32>
    %699 = arith.addf %689, %698 : vector<4x4xf32>
    %c139 = arith.constant 139 : index
    %700 = memref.load %arg1[%c139] : memref<144xf32, #tpu.memory_space<smem>>
    %701 = vector.broadcast %700 : f32 to vector<4x4xf32>
    %702 = arith.mulf %701, %695 : vector<4x4xf32>
    %703 = arith.addf %693, %702 : vector<4x4xf32>
    %c0_285 = arith.constant 0 : index
    %c7_286 = arith.constant 7 : index
    %c1_287 = arith.constant 1 : index
    %c2_288 = arith.constant 2 : index
    %704 = vector.load %arg3[%c0_285, %c7_286, %c1_287, %c2_288] : memref<1x8x6x6xf32, #tpu.memory_space<vmem>>, vector<1x1x4x4xf32>
    %705 = vector.shape_cast %704 : vector<1x1x4x4xf32> to vector<4x4xf32>
    %c68 = arith.constant 68 : index
    %706 = memref.load %arg1[%c68] : memref<144xf32, #tpu.memory_space<smem>>
    %707 = vector.broadcast %706 : f32 to vector<4x4xf32>
    %708 = arith.mulf %707, %705 : vector<4x4xf32>
    %709 = arith.addf %699, %708 : vector<4x4xf32>
    %c140 = arith.constant 140 : index
    %710 = memref.load %arg1[%c140] : memref<144xf32, #tpu.memory_space<smem>>
    %711 = vector.broadcast %710 : f32 to vector<4x4xf32>
    %712 = arith.mulf %711, %705 : vector<4x4xf32>
    %713 = arith.addf %703, %712 : vector<4x4xf32>
    %c0_289 = arith.constant 0 : index
    %c7_290 = arith.constant 7 : index
    %c2_291 = arith.constant 2 : index
    %c0_292 = arith.constant 0 : index
    %714 = vector.load %arg3[%c0_289, %c7_290, %c2_291, %c0_292] : memref<1x8x6x6xf32, #tpu.memory_space<vmem>>, vector<1x1x4x4xf32>
    %715 = vector.shape_cast %714 : vector<1x1x4x4xf32> to vector<4x4xf32>
    %c69 = arith.constant 69 : index
    %716 = memref.load %arg1[%c69] : memref<144xf32, #tpu.memory_space<smem>>
    %717 = vector.broadcast %716 : f32 to vector<4x4xf32>
    %718 = arith.mulf %717, %715 : vector<4x4xf32>
    %719 = arith.addf %709, %718 : vector<4x4xf32>
    %c141 = arith.constant 141 : index
    %720 = memref.load %arg1[%c141] : memref<144xf32, #tpu.memory_space<smem>>
    %721 = vector.broadcast %720 : f32 to vector<4x4xf32>
    %722 = arith.mulf %721, %715 : vector<4x4xf32>
    %723 = arith.addf %713, %722 : vector<4x4xf32>
    %c0_293 = arith.constant 0 : index
    %c7_294 = arith.constant 7 : index
    %c2_295 = arith.constant 2 : index
    %c1_296 = arith.constant 1 : index
    %724 = vector.load %arg3[%c0_293, %c7_294, %c2_295, %c1_296] : memref<1x8x6x6xf32, #tpu.memory_space<vmem>>, vector<1x1x4x4xf32>
    %725 = vector.shape_cast %724 : vector<1x1x4x4xf32> to vector<4x4xf32>
    %c70 = arith.constant 70 : index
    %726 = memref.load %arg1[%c70] : memref<144xf32, #tpu.memory_space<smem>>
    %727 = vector.broadcast %726 : f32 to vector<4x4xf32>
    %728 = arith.mulf %727, %725 : vector<4x4xf32>
    %729 = arith.addf %719, %728 : vector<4x4xf32>
    %c142 = arith.constant 142 : index
    %730 = memref.load %arg1[%c142] : memref<144xf32, #tpu.memory_space<smem>>
    %731 = vector.broadcast %730 : f32 to vector<4x4xf32>
    %732 = arith.mulf %731, %725 : vector<4x4xf32>
    %733 = arith.addf %723, %732 : vector<4x4xf32>
    %c0_297 = arith.constant 0 : index
    %c7_298 = arith.constant 7 : index
    %c2_299 = arith.constant 2 : index
    %c2_300 = arith.constant 2 : index
    %734 = vector.load %arg3[%c0_297, %c7_298, %c2_299, %c2_300] : memref<1x8x6x6xf32, #tpu.memory_space<vmem>>, vector<1x1x4x4xf32>
    %735 = vector.shape_cast %734 : vector<1x1x4x4xf32> to vector<4x4xf32>
    %c71 = arith.constant 71 : index
    %736 = memref.load %arg1[%c71] : memref<144xf32, #tpu.memory_space<smem>>
    %737 = vector.broadcast %736 : f32 to vector<4x4xf32>
    %738 = arith.mulf %737, %735 : vector<4x4xf32>
    %739 = arith.addf %729, %738 : vector<4x4xf32>
    %c143 = arith.constant 143 : index
    %740 = memref.load %arg1[%c143] : memref<144xf32, #tpu.memory_space<smem>>
    %741 = vector.broadcast %740 : f32 to vector<4x4xf32>
    %742 = arith.mulf %741, %735 : vector<4x4xf32>
    %743 = arith.addf %733, %742 : vector<4x4xf32>
    %cst_301 = arith.constant 0.000000e+00 : f32
    %744 = vector.broadcast %cst_301 : f32 to vector<4x4xf32>
    %745 = arith.maximumf %739, %744 : vector<4x4xf32>
    %cst_302 = arith.constant dense<0xFF800000> : vector<4xf32>
    %746 = vector.multi_reduction <maximumf>, %745, %cst_302 [1] : vector<4x4xf32> to vector<4xf32>
    %747 = vector.shape_cast %746 : vector<4xf32> to vector<4x1xf32>
    %cst_303 = arith.constant dense<0xFF800000> : vector<1xf32>
    %748 = vector.multi_reduction <maximumf>, %747, %cst_303 [0] : vector<4x1xf32> to vector<1xf32>
    %749 = vector.shape_cast %748 : vector<1xf32> to vector<1x1xf32>
    %cst_304 = arith.constant dense<0x7F800000> : vector<4xf32>
    %750 = vector.multi_reduction <minimumf>, %745, %cst_304 [1] : vector<4x4xf32> to vector<4xf32>
    %751 = vector.shape_cast %750 : vector<4xf32> to vector<4x1xf32>
    %cst_305 = arith.constant dense<0x7F800000> : vector<1xf32>
    %752 = vector.multi_reduction <minimumf>, %751, %cst_305 [0] : vector<4x1xf32> to vector<1xf32>
    %753 = vector.shape_cast %752 : vector<1xf32> to vector<1x1xf32>
    %754 = vector.broadcast %753 : vector<1x1xf32> to vector<4x4xf32>
    %755 = arith.subf %745, %754 : vector<4x4xf32>
    %756 = arith.subf %749, %753 : vector<1x1xf32>
    %cst_306 = arith.constant 1.000000e-07 : f32
    %757 = vector.broadcast %cst_306 : f32 to vector<1x1xf32>
    %758 = arith.addf %756, %757 : vector<1x1xf32>
    %759 = vector.broadcast %758 : vector<1x1xf32> to vector<4x4xf32>
    %760 = arith.divf %755, %759 : vector<4x4xf32>
    %761 = arith.subf %760, %15 : vector<4x4xf32>
    %cst_307 = arith.constant 1.57079637 : f32
    %762 = vector.broadcast %cst_307 : f32 to vector<4x4xf32>
    %763 = arith.mulf %761, %762 : vector<4x4xf32>
    %764 = math.cos %763 : vector<4x4xf32>
    %c0_308 = arith.constant 0 : index
    %c0_309 = arith.constant 0 : index
    %c0_310 = arith.constant 0 : index
    %c0_311 = arith.constant 0 : index
    %765 = vector.load %arg4[%c0_308, %c0_309, %c0_310, %c0_311] : memref<1x2x4x4xf32, #tpu.memory_space<vmem>>, vector<1x1x4x4xf32>
    %766 = vector.shape_cast %765 : vector<1x1x4x4xf32> to vector<4x4xf32>
    %767 = vector.shape_cast %764 : vector<4x4xf32> to vector<1x1x4x4xf32>
    tpu.vector_store %arg4[%c0_308, %c0_309, %c0_310, %c0_311], %767 {strides = array<i32>} : memref<1x2x4x4xf32, #tpu.memory_space<vmem>>, vector<1x1x4x4xf32>,
    %cst_312 = arith.constant 0.000000e+00 : f32
    %768 = vector.broadcast %cst_312 : f32 to vector<4x4xf32>
    %769 = arith.maximumf %743, %768 : vector<4x4xf32>
    %cst_313 = arith.constant dense<0xFF800000> : vector<4xf32>
    %770 = vector.multi_reduction <maximumf>, %769, %cst_313 [1] : vector<4x4xf32> to vector<4xf32>
    %771 = vector.shape_cast %770 : vector<4xf32> to vector<4x1xf32>
    %cst_314 = arith.constant dense<0xFF800000> : vector<1xf32>
    %772 = vector.multi_reduction <maximumf>, %771, %cst_314 [0] : vector<4x1xf32> to vector<1xf32>
    %773 = vector.shape_cast %772 : vector<1xf32> to vector<1x1xf32>
    %cst_315 = arith.constant dense<0x7F800000> : vector<4xf32>
    %774 = vector.multi_reduction <minimumf>, %769, %cst_315 [1] : vector<4x4xf32> to vector<4xf32>
    %775 = vector.shape_cast %774 : vector<4xf32> to vector<4x1xf32>
    %cst_316 = arith.constant dense<0x7F800000> : vector<1xf32>
    %776 = vector.multi_reduction <minimumf>, %775, %cst_316 [0] : vector<4x1xf32> to vector<1xf32>
    %777 = vector.shape_cast %776 : vector<1xf32> to vector<1x1xf32>
    %778 = vector.broadcast %777 : vector<1x1xf32> to vector<4x4xf32>
    %779 = arith.subf %769, %778 : vector<4x4xf32>
    %780 = arith.subf %773, %777 : vector<1x1xf32>
    %cst_317 = arith.constant 1.000000e-07 : f32
    %781 = vector.broadcast %cst_317 : f32 to vector<1x1xf32>
    %782 = arith.addf %780, %781 : vector<1x1xf32>
    %783 = vector.broadcast %782 : vector<1x1xf32> to vector<4x4xf32>
    %784 = arith.divf %779, %783 : vector<4x4xf32>
    %785 = arith.subf %784, %15 : vector<4x4xf32>
    %cst_318 = arith.constant 1.57079637 : f32
    %786 = vector.broadcast %cst_318 : f32 to vector<4x4xf32>
    %787 = arith.mulf %785, %786 : vector<4x4xf32>
    %788 = math.cos %787 : vector<4x4xf32>
    %c0_319 = arith.constant 0 : index
    %c1_320 = arith.constant 1 : index
    %c0_321 = arith.constant 0 : index
    %c0_322 = arith.constant 0 : index
    %789 = vector.load %arg4[%c0_319, %c1_320, %c0_321, %c0_322] : memref<1x2x4x4xf32, #tpu.memory_space<vmem>>, vector<1x1x4x4xf32>
    %790 = vector.shape_cast %789 : vector<1x1x4x4xf32> to vector<4x4xf32>
    %791 = vector.shape_cast %788 : vector<4x4xf32> to vector<1x1x4x4xf32>
    tpu.vector_store %arg4[%c0_319, %c1_320, %c0_321, %c0_322], %791 {strides = array<i32>} : memref<1x2x4x4xf32, #tpu.memory_space<vmem>>, vector<1x1x4x4xf32>,
    return
  }
  func.func @transform_0(%arg0: i32) -> i32 {
    %c0_i32 = arith.constant 0 : i32
    %c0_i32_0 = arith.constant 0 : i32
    return %c0_i32 : i32
  }
  func.func @transform_1(%arg0: i32) -> i32 {
    %c0_i32 = arith.constant 0 : i32
    %c0_i32_0 = arith.constant 0 : i32
    return %c0_i32 : i32
  }
  func.func @transform_2(%arg0: i32) -> (i32, i32, i32, i32) {
    %c0_i32 = arith.constant 0 : i32
    %c0_i32_0 = arith.constant 0 : i32
    %c0_i32_1 = arith.constant 0 : i32
    %c0_i32_2 = arith.constant 0 : i32
    return %arg0, %c0_i32, %c0_i32_0, %c0_i32_1 : i32, i32, i32, i32
  }
  func.func @transform_3(%arg0: i32) -> (i32, i32, i32, i32) {
    %c0_i32 = arith.constant 0 : i32
    %c0_i32_0 = arith.constant 0 : i32
    %c0_i32_1 = arith.constant 0 : i32
    %c0_i32_2 = arith.constant 0 : i32
    return %arg0, %c0_i32, %c0_i32_0, %c0_i32_1 : i32, i32, i32, i32
  }
}

</mosaic_0001>

<llo_original>
// kernel: tpu_custom_call.1
$region0: #{tpu_custom_call.1}
  #allocation0 [shape = 'u32[]', space=smem, size = 0x4, offset = 0x4, fixed_abs, tag = 'smem constant byte address 0x4 - core index']
  #allocation1 [shape = 'u32[72,128]{1,0:T(1,128)}', space=vmem, size = 0x9000, scoped, tag = 'internal scratch']
  %s0 = inlined_call_operand.vmem [shape: f32[144], index: 0, kind: input, shape index: {}]
  %s1 = inlined_call_operand.vmem [shape: f32[2], index: 1, kind: input, shape index: {}]
  %s2 = inlined_call_operand.vmem [shape: f32[2,8,6,6], index: 2, kind: input, shape index: {}]
  %s3 = inlined_call_operand.hbm [shape: f32[2,2,4,4], index: 3, kind: output, shape index: {}]
  %s4 = sld [smem:[#allocation0]]
  $region53: #{tpu_custom_call.1} parent=0
    _
  %s6 = ssub.s32 1, %s4
  %s7 = scalar_select 0, %s6, %s4
  $region1: #{tpu_custom_call.1} parent=0
    #allocation2 [shape = 'u8[1024]{0}', space=smem, size = 0x400, scoped, tag = 'input window, operand 0, single buffered']
    #allocation3 [shape = 's32[2]{0}', space=sflag, size = 0x8, scoped, tag = 'scoped memory for tpu_custom_call.1']
    #allocation4 [shape = 's32[2]{0}', space=sflag, size = 0x8, scoped, tag = 'scoped memory for tpu_custom_call.1']
    #allocation5 [shape = 'u8[512]{0}', space=smem, size = 0x200, scoped, tag = 'input window, operand 1, single buffered']
    #allocation6 [shape = 's32[1]{0}', space=sflag, size = 0x4, scoped, tag = 'scoped memory for tpu_custom_call.1']
    #allocation7 [shape = 'u8[8192]{0}', space=vmem, size = 0x2000, scoped, tag = 'output window, operand 0']
    %8 = vsyncpa [#allocation4], 0
    %9 = vsyncpa [#allocation6], 0
    %10 = vsyncpa [#allocation3], 0
    %s11 = scalar_lea.sflag [#allocation3], 1
    %12 = vsyncpa %s11, 0
    loop: start=0, step=1, limit=4
    $region2: #{tpu_custom_call.1} parent=1 // loop_pre_header
      _
    $region3: #{tpu_custom_call.1} parent=1 // loop_header
      %s14 = sphi 0, %s18
      %p15 = scmp.ge.s32.totalorder %s14, 4
      %s22 = sphi 0, %s22
      %s24 = sphi 0, %s22
      %s25 = sphi 0, %s24
      %s39 = sphi 0, %s25
      %s43 = sphi 0, %s43
      %s45 = sphi 0, %s43
      %s46 = sphi 0, %s45
      %s60 = sphi 0, %s46
      %s66 = sphi 0, %s68
      %s69 = sphi 0, %s66
      %s70 = sphi 0, %s69
      %s86 = sphi 0, %s70
      %s92 = sphi 0, %s94
      %s95 = sphi 0, %s92
      %s96 = sphi 0, %s95
      %s112 = sphi 0, %s96
    $region4: #{tpu_custom_call.1} parent=1 // loop_header_branch
      %17 = sbr.rel (%p15) target = $region8
    $region5: #{tpu_custom_call.1} parent=1 // loop_body
      %s19 = ssub.s32 %s14, 1
      %s20 = ssub.s32 %s14, 2
      %s21 = sadd.s32 %s14, 1
      %s23 = sadd.s32 %s22, 1
      %p26 = scmp.eq.s32.totalorder %s14, 1
      %p27 = scmp.ne.s32.totalorder %s22, %s24
      %p28 = scmp.eq.s32.totalorder %s14, 0
      %p29 = por %p27, %p28
      %p30 = scmp.ne.s32.totalorder %s22, %s24
      %p31 = scmp.eq.s32.totalorder %s19, 1
      %p32 = por %p30, %p31
      %p33 = scmp.ne.s32.totalorder %s24, %s25
      %p34 = scmp.eq.s32.totalorder %s19, 0
      %p35 = por %p33, %p34
      %p36 = scmp.ne.s32.totalorder %s24, %s25
      %p37 = scmp.eq.s32.totalorder %s20, 1
      %p38 = por %p36, %p37
      %p40 = scmp.ne.s32.totalorder %s25, %s39
      %p41 = scmp.eq.s32.totalorder %s20, 0
      %p42 = por %p40, %p41
      %s44 = sadd.s32 %s43, 1
      %p47 = scmp.eq.s32.totalorder %s14, 1
      %p48 = scmp.ne.s32.totalorder %s43, %s45
      %p49 = scmp.eq.s32.totalorder %s14, 0
      %p50 = por %p48, %p49
      %p51 = scmp.ne.s32.totalorder %s43, %s45
      %p52 = scmp.eq.s32.totalorder %s19, 1
      %p53 = por %p51, %p52
      %p54 = scmp.ne.s32.totalorder %s45, %s46
      %p55 = scmp.eq.s32.totalorder %s19, 0
      %p56 = por %p54, %p55
      %p57 = scmp.ne.s32.totalorder %s45, %s46
      %p58 = scmp.eq.s32.totalorder %s20, 1
      %p59 = por %p57, %p58
      %p61 = scmp.ne.s32.totalorder %s46, %s60
      %p62 = scmp.eq.s32.totalorder %s20, 0
      %p63 = por %p61, %p62
      %s64 = ssub.s32 %s14, %s21
      %p65 = scmp.eq.s32.totalorder %s64, 0
      %s67 = sadd.s32 %s66, 1
      %s68 = scalar_select %p65, %s66, %s67
      %p71 = pneg %p65
      %p72 = scmp.eq.s32.totalorder %s14, 1
      %p73 = por %p71, %p72
      %p74 = scmp.ne.s32.totalorder %s66, %s69
      %p75 = scmp.eq.s32.totalorder %s14, 0
      %p76 = por %p74, %p75
      %p77 = scmp.ne.s32.totalorder %s66, %s69
      %p78 = scmp.eq.s32.totalorder %s19, 1
      %p79 = por %p77, %p78
      %p80 = scmp.ne.s32.totalorder %s69, %s70
      %p81 = scmp.eq.s32.totalorder %s19, 0
      %p82 = por %p80, %p81
      %p83 = scmp.ne.s32.totalorder %s69, %s70
      %p84 = scmp.eq.s32.totalorder %s20, 1
      %p85 = por %p83, %p84
      %p87 = scmp.ne.s32.totalorder %s70, %s86
      %p88 = scmp.eq.s32.totalorder %s20, 0
      %p89 = por %p87, %p88
      %s90 = ssub.s32 %s14, %s21
      %p91 = scmp.eq.s32.totalorder %s90, 0
      %s93 = sadd.s32 %s92, 1
      %s94 = scalar_select %p91, %s92, %s93
      %p97 = pneg %p91
      %p98 = scmp.eq.s32.totalorder %s14, 1
      %p99 = por %p97, %p98
      %p100 = scmp.ne.s32.totalorder %s92, %s95
      %p101 = scmp.eq.s32.totalorder %s14, 0
      %p102 = por %p100, %p101
      %p103 = scmp.ne.s32.totalorder %s92, %s95
      %p104 = scmp.eq.s32.totalorder %s19, 1
      %p105 = por %p103, %p104
      %p106 = scmp.ne.s32.totalorder %s95, %s96
      %p107 = scmp.eq.s32.totalorder %s19, 0
      %p108 = por %p106, %p107
      %p109 = scmp.ne.s32.totalorder %s95, %s96
      %p110 = scmp.eq.s32.totalorder %s20, 1
      %p111 = por %p109, %p110
      %p113 = scmp.ne.s32.totalorder %s96, %s112
      %p114 = scmp.eq.s32.totalorder %s20, 0
      %p115 = por %p113, %p114
      %p116 = scmp.le.s32.totalorder 1, %s14
      %p117 = scmp.lt.s32.totalorder %s14, 3
      %p118 = pnand %p116, %p117
      %p119 = pneg %p118
      // Predicated region
      $region9: #{tpu_custom_call.1} parent=5 // pred_check
        _
      $region10: #{tpu_custom_call.1} parent=5 // pred_check_branch
        %121 = sbr.rel (%p118) target = $region12
      $region11: #{tpu_custom_call.1} parent=5 // pred_region
        %s122 = ssub.s32 %s14, 1
        // Predicated region
        $region13: #{tpu_custom_call.1} parent=11 // pred_check
          %p123 = pneg %p35
        $region14: #{tpu_custom_call.1} parent=11 // pred_check_branch
          %125 = sbr.rel (%p123) target = $region16
        $region15: #{tpu_custom_call.1} parent=11 // pred_region
          %127 = vsyncadd [#allocation4], 0
          %s129 = sshll.u32 %s0, 4
          %s130 = int_to_ptr.vmem [resolvable:$true] %s129
          %132 = dma.vmem_to_smem %s130, 32, [#allocation2], [#allocation4]
        $region16: #{tpu_custom_call.1} parent=11 // pred_fallthru
          _
        // Predicated region
        $region17: #{tpu_custom_call.1} parent=11 // pred_check
          %p133 = pneg %p56
        $region18: #{tpu_custom_call.1} parent=11 // pred_check_branch
          %135 = sbr.rel (%p133) target = $region20
        $region19: #{tpu_custom_call.1} parent=11 // pred_region
          %137 = vsyncadd [#allocation6], 0
          %s139 = sshll.u32 %s1, 4
          %s140 = int_to_ptr.vmem [resolvable:$true] %s139
          %142 = dma.vmem_to_smem %s140, 16, [#allocation5], [#allocation6]
        $region20: #{tpu_custom_call.1} parent=11 // pred_fallthru
          _
      $region12: #{tpu_custom_call.1} parent=5 // pred_fallthru
        _
      %p143 = scmp.lt.s32.totalorder %s14, 2
      // Predicated region
      $region21: #{tpu_custom_call.1} parent=5 // pred_check
        %p144 = pneg %p143
      $region22: #{tpu_custom_call.1} parent=5 // pred_check_branch
        %146 = sbr.rel (%p144) target = $region24
      $region23: #{tpu_custom_call.1} parent=5 // pred_region
        // Predicated region
        $region25: #{tpu_custom_call.1} parent=23 // pred_check
          %p147 = pneg %p76
        $region26: #{tpu_custom_call.1} parent=23 // pred_check_branch
          %149 = sbr.rel (%p147) target = $region28
        $region27: #{tpu_custom_call.1} parent=23 // pred_region
          %p150 = scmp.lt.s32.totalorder %s14, 1
          %s151 = scalar_select %p150, %s14, 1
          %s152 = smul.addr %s151, 8
          %s153 = smul.addr %s152, 8
          %s154 = scalar_lea.vmem %s2, %s153
        $region28: #{tpu_custom_call.1} parent=23 // pred_fallthru
          _
      $region24: #{tpu_custom_call.1} parent=5 // pred_fallthru
        _
      %p155 = scmp.le.s32.totalorder 1, %s14
      %p156 = scmp.lt.s32.totalorder %s14, 3
      %p157 = pnand %p155, %p156
      %p158 = pneg %p157
      // Predicated region
      $region29: #{tpu_custom_call.1} parent=5 // pred_check
        _
      $region30: #{tpu_custom_call.1} parent=5 // pred_check_branch
        %160 = sbr.rel (%p157) target = $region32
      $region31: #{tpu_custom_call.1} parent=5 // pred_region
        %s161 = ssub.s32 %s14, 1
        // Predicated region
        $region33: #{tpu_custom_call.1} parent=31 // pred_check
          %p162 = pneg %p35
        $region34: #{tpu_custom_call.1} parent=31 // pred_check_branch
          %164 = sbr.rel (%p162) target = $region36
        $region35: #{tpu_custom_call.1} parent=31 // pred_region
          %166 = dma.done [#allocation4], 32
        $region36: #{tpu_custom_call.1} parent=31 // pred_fallthru
          _
        // Predicated region
        $region37: #{tpu_custom_call.1} parent=31 // pred_check
          %p167 = pneg %p56
        $region38: #{tpu_custom_call.1} parent=31 // pred_check_branch
          %169 = sbr.rel (%p167) target = $region40
        $region39: #{tpu_custom_call.1} parent=31 // pred_region
          %171 = dma.done [#allocation6], 16
        $region40: #{tpu_custom_call.1} parent=31 // pred_fallthru
          _
        %172 = sfence
        %p173 = pneg %p35
        %p174 = pneg %p32
        %p175 = pneg %p56
        %p176 = pneg %p53
        %p177 = scmp.lt.s32.totalorder %s19, 1
        %s178 = scalar_select %p177, %s19, 1
        %s179 = smul.addr %s178, 8
        %s180 = smul.addr %s179, 8
        %s181 = scalar_lea.vmem %s2, %s180
        %p182 = pneg %p82
        %p183 = pneg %p79
        %p184 = pneg %p108
        %p185 = pneg %p105
        %s186 = sand.u32 %s95, 1
        %s187 = scalar_lea.sflag [#allocation3], %s186
        %s188 = sand.u32 %s95, 1
        %s189 = smul.addr %s188, 8
        %s190 = scalar_lea.vmem [#allocation7], %s189
        %p191 = scmp.lt.s32.totalorder %s19, 1
        %s192 = scalar_select %p191, %s19, 1
        %s193 = smul.addr %s192, 8
        %s194 = smul.addr %s193, 8
        %s195 = scalar_lea.vmem %s2, %s194
        %v196 = vld [vmem:[%s195 + $0x1] sm:$0xf]
        %v197 = vld [vmem:[%s195 + $0x9] sm:$0xf]
        %v198 = vld [vmem:[%s195 + $0x11] sm:$0xf]
        %v199 = vld [vmem:[%s195 + $0x19] sm:$0xf]
        %v200 = vld [vmem:[%s195 + $0x21] sm:$0xf]
        %v201 = vld [vmem:[%s195 + $0x29] sm:$0xf]
        %v202 = vld [vmem:[%s195 + $0x31] sm:$0xf]
        %v203 = vld [vmem:[%s195 + $0x39] sm:$0xf]
        %vm204 = vcmask 35848
        %v205 = vsel %vm204, %v196, 0.0
        %v206 = vsel %vm204, %v197, 0.0
        %v207 = vadd.f32 %v205, %v206
        %v208 = vsel %vm204, %v198, 0.0
        %v209 = vadd.f32 %v207, %v208
        %v210 = vsel %vm204, %v199, 0.0
        %v211 = vadd.f32 %v209, %v210
        %v212 = vsel %vm204, %v200, 0.0
        %v213 = vadd.f32 %v211, %v212
        %v214 = vsel %vm204, %v201, 0.0
        %v215 = vadd.f32 %v213, %v214
        %v216 = vsel %vm204, %v202, 0.0
        %v217 = vadd.f32 %v215, %v216
        %v218 = vsel %vm204, %v203, 0.0
        %v219 = vadd.f32 %v217, %v218
        %v220 = vmul.f32 %v219, 0.125
        %222 = vrot.lane.b32.xlu0 %v220, 127
        %v223 = vpop.permute.xlu0 %222
        %vm225 = vcmask 27648
        %v226 = vsel %vm225, %v223, 0.0
        %227 = vadd.xlane.f32.xlu0 %v226
        %v228 = vpop.xlane.xlu0 %227
        %v229 = vrcp.pop 4.0
        %v230 = vmul.f32 4.0, %v229
        %v231 = vsub.f32 1.0, %v230
        %v232 = vmul.f32 %v229, %v231
        %v233 = vadd.f32 %v229, %v232
        %vm234 = vweird.f32 %v229
        %v235 = vsel %vm234, %v229, %v233
        %v236 = vmul.f32 %v228, %v235
        %v237 = vsel %vm204, %v220, 0.0
        %v238 = vrot.slane %v237, 4
        %v239 = vadd.f32 %v237, %v238
        %v240 = vrot.slane %v239, 2
        %v241 = vadd.f32 %v239, %v240
        %v242 = vrot.slane %v241, 1
        %v243 = vadd.f32 %v241, %v242
        %v244 = vmul.f32 %v243, %v235
        %v245 = vmul.f32 %v236, %v244
        %s246 = sld [smem:[#allocation5]]
        %v247 = vstv %s246
        %v248 = vadd.f32 %v247, 0.0
        %s249 = sld [smem:[#allocation5 + $0x1]]
        %v250 = vstv %s249
        %v251 = vadd.f32 %v250, 0.0
        %v252 = vld [vmem:[%s195] sm:$0xf]
        %s253 = sld [smem:[#allocation2]]
        %v254 = vstv %s253
        %v255 = vmul.f32 %v254, %v252
        %v256 = vadd.f32 %v248, %v255
        %s257 = sld [smem:[#allocation2 + $0x48]]
        %v258 = vstv %s257
        %v259 = vmul.f32 %v258, %v252
        %v260 = vadd.f32 %v251, %v259
        %s261 = sld [smem:[#allocation2 + $0x1]]
        %v262 = vstv %s261
        %v263 = vmul.f32 %v262, %v252
        %265 = vrot.lane.b32.xlu0 %v263, 127
        %v266 = vpop.permute.xlu0 %265
        %v268 = vadd.f32 %v256, %v266
        %s269 = sld [smem:[#allocation2 + $0x49]]
        %v270 = vstv %s269
        %v271 = vmul.f32 %v270, %v252
        %273 = vrot.lane.b32.xlu0 %v271, 127
        %v274 = vpop.permute.xlu0 %273
        %v276 = vadd.f32 %v260, %v274
        %s277 = sld [smem:[#allocation2 + $0x2]]
        %v278 = vstv %s277
        %v279 = vmul.f32 %v278, %v252
        %281 = vrot.lane.b32.xlu0 %v279, 126
        %v282 = vpop.permute.xlu0 %281
        %v284 = vadd.f32 %v268, %v282
        %s285 = sld [smem:[#allocation2 + $0x4a]]
        %v286 = vstv %s285
        %v287 = vmul.f32 %v286, %v252
        %289 = vrot.lane.b32.xlu0 %v287, 126
        %v290 = vpop.permute.xlu0 %289
        %v292 = vadd.f32 %v276, %v290
        %v293 = vld [vmem:[%s195 + $0x1] sm:$0xf]
        %s294 = sld [smem:[#allocation2 + $0x3]]
        %v295 = vstv %s294
        %v296 = vmul.f32 %v295, %v293
        %v297 = vadd.f32 %v284, %v296
        %s298 = sld [smem:[#allocation2 + $0x4b]]
        %v299 = vstv %s298
        %v300 = vmul.f32 %v299, %v293
        %v301 = vadd.f32 %v292, %v300
        %s302 = sld [smem:[#allocation2 + $0x4]]
        %v303 = vstv %s302
        %v304 = vmul.f32 %v303, %v293
        %306 = vrot.lane.b32.xlu0 %v304, 127
        %v307 = vpop.permute.xlu0 %306
        %v309 = vadd.f32 %v297, %v307
        %s310 = sld [smem:[#allocation2 + $0x4c]]
        %v311 = vstv %s310
        %v312 = vmul.f32 %v311, %v293
        %314 = vrot.lane.b32.xlu0 %v312, 127
        %v315 = vpop.permute.xlu0 %314
        %v317 = vadd.f32 %v301, %v315
        %s318 = sld [smem:[#allocation2 + $0x5]]
        %v319 = vstv %s318
        %v320 = vmul.f32 %v319, %v293
        %322 = vrot.lane.b32.xlu0 %v320, 126
        %v323 = vpop.permute.xlu0 %322
        %v325 = vadd.f32 %v309, %v323
        %s326 = sld [smem:[#allocation2 + $0x4d]]
        %v327 = vstv %s326
        %v328 = vmul.f32 %v327, %v293
        %330 = vrot.lane.b32.xlu0 %v328, 126
        %v331 = vpop.permute.xlu0 %330
        %v333 = vadd.f32 %v317, %v331
        %v334 = vld [vmem:[%s195 + $0x2] sm:$0xf]
        %s335 = sld [smem:[#allocation2 + $0x6]]
        %v336 = vstv %s335
        %v337 = vmul.f32 %v336, %v334
        %v338 = vadd.f32 %v325, %v337
        %s339 = sld [smem:[#allocation2 + $0x4e]]
        %v340 = vstv %s339
        %v341 = vmul.f32 %v340, %v334
        %v342 = vadd.f32 %v333, %v341
        %s343 = sld [smem:[#allocation2 + $0x7]]
        %v344 = vstv %s343
        %v345 = vmul.f32 %v344, %v334
        %347 = vrot.lane.b32.xlu0 %v345, 127
        %v348 = vpop.permute.xlu0 %347
        %v350 = vadd.f32 %v338, %v348
        %s351 = sld [smem:[#allocation2 + $0x4f]]
        %v352 = vstv %s351
        %v353 = vmul.f32 %v352, %v334
        %355 = vrot.lane.b32.xlu0 %v353, 127
        %v356 = vpop.permute.xlu0 %355
        %v358 = vadd.f32 %v342, %v356
        %s359 = sld [smem:[#allocation2 + $0x8]]
        %v360 = vstv %s359
        %v361 = vmul.f32 %v360, %v334
        %363 = vrot.lane.b32.xlu0 %v361, 126
        %v364 = vpop.permute.xlu0 %363
        %v366 = vadd.f32 %v350, %v364
        %s367 = sld [smem:[#allocation2 + $0x50]]
        %v368 = vstv %s367
        %v369 = vmul.f32 %v368, %v334
        %371 = vrot.lane.b32.xlu0 %v369, 126
        %v372 = vpop.permute.xlu0 %371
        %v374 = vadd.f32 %v358, %v372
        %s375 = scalar_lea.vmem %s195, 8
        %v376 = vld [vmem:[%s375] sm:$0xf]
        %s377 = sld [smem:[#allocation2 + $0x9]]
        %v378 = vstv %s377
        %v379 = vmul.f32 %v378, %v376
        %v380 = vadd.f32 %v366, %v379
        %s381 = sld [smem:[#allocation2 + $0x51]]
        %v382 = vstv %s381
        %v383 = vmul.f32 %v382, %v376
        %v384 = vadd.f32 %v374, %v383
        %s385 = sld [smem:[#allocation2 + $0xa]]
        %v386 = vstv %s385
        %v387 = vmul.f32 %v386, %v376
        %389 = vrot.lane.b32.xlu0 %v387, 127
        %v390 = vpop.permute.xlu0 %389
        %v392 = vadd.f32 %v380, %v390
        %s393 = sld [smem:[#allocation2 + $0x52]]
        %v394 = vstv %s393
        %v395 = vmul.f32 %v394, %v376
        %397 = vrot.lane.b32.xlu0 %v395, 127
        %v398 = vpop.permute.xlu0 %397
        %v400 = vadd.f32 %v384, %v398
        %s401 = sld [smem:[#allocation2 + $0xb]]
        %v402 = vstv %s401
        %v403 = vmul.f32 %v402, %v376
        %405 = vrot.lane.b32.xlu0 %v403, 126
        %v406 = vpop.permute.xlu0 %405
        %v408 = vadd.f32 %v392, %v406
        %s409 = sld [smem:[#allocation2 + $0x53]]
        %v410 = vstv %s409
        %v411 = vmul.f32 %v410, %v376
        %413 = vrot.lane.b32.xlu0 %v411, 126
        %v414 = vpop.permute.xlu0 %413
        %v416 = vadd.f32 %v400, %v414
        %v417 = vld [vmem:[%s375 + $0x1] sm:$0xf]
        %s418 = sld [smem:[#allocation2 + $0xc]]
        %v419 = vstv %s418
        %v420 = vmul.f32 %v419, %v417
        %v421 = vadd.f32 %v408, %v420
        %s422 = sld [smem:[#allocation2 + $0x54]]
        %v423 = vstv %s422
        %v424 = vmul.f32 %v423, %v417
        %v425 = vadd.f32 %v416, %v424
        %s426 = sld [smem:[#allocation2 + $0xd]]
        %v427 = vstv %s426
        %v428 = vmul.f32 %v427, %v417
        %430 = vrot.lane.b32.xlu0 %v428, 127
        %v431 = vpop.permute.xlu0 %430
        %v433 = vadd.f32 %v421, %v431
        %s434 = sld [smem:[#allocation2 + $0x55]]
        %v435 = vstv %s434
        %v436 = vmul.f32 %v435, %v417
        %438 = vrot.lane.b32.xlu0 %v436, 127
        %v439 = vpop.permute.xlu0 %438
        %v441 = vadd.f32 %v425, %v439
        %s442 = sld [smem:[#allocation2 + $0xe]]
        %v443 = vstv %s442
        %v444 = vmul.f32 %v443, %v417
        %446 = vrot.lane.b32.xlu0 %v444, 126
        %v447 = vpop.permute.xlu0 %446
        %v449 = vadd.f32 %v433, %v447
        %s450 = sld [smem:[#allocation2 + $0x56]]
        %v451 = vstv %s450
        %v452 = vmul.f32 %v451, %v417
        %454 = vrot.lane.b32.xlu0 %v452, 126
        %v455 = vpop.permute.xlu0 %454
        %v457 = vadd.f32 %v441, %v455
        %v458 = vld [vmem:[%s375 + $0x2] sm:$0xf]
        %s459 = sld [smem:[#allocation2 + $0xf]]
        %v460 = vstv %s459
        %v461 = vmul.f32 %v460, %v458
        %v462 = vadd.f32 %v449, %v461
        %s463 = sld [smem:[#allocation2 + $0x57]]
        %v464 = vstv %s463
        %v465 = vmul.f32 %v464, %v458
        %v466 = vadd.f32 %v457, %v465
        %s467 = sld [smem:[#allocation2 + $0x10]]
        %v468 = vstv %s467
        %v469 = vmul.f32 %v468, %v458
        %471 = vrot.lane.b32.xlu0 %v469, 127
        %v472 = vpop.permute.xlu0 %471
        %v474 = vadd.f32 %v462, %v472
        %s475 = sld [smem:[#allocation2 + $0x58]]
        %v476 = vstv %s475
        %v477 = vmul.f32 %v476, %v458
        %479 = vrot.lane.b32.xlu0 %v477, 127
        %v480 = vpop.permute.xlu0 %479
        %v482 = vadd.f32 %v466, %v480
        %s483 = sld [smem:[#allocation2 + $0x11]]
        %v484 = vstv %s483
        %v485 = vmul.f32 %v484, %v458
        %487 = vrot.lane.b32.xlu0 %v485, 126
        %v488 = vpop.permute.xlu0 %487
        %v490 = vadd.f32 %v474, %v488
        %s491 = sld [smem:[#allocation2 + $0x59]]
        %v492 = vstv %s491
        %v493 = vmul.f32 %v492, %v458
        %495 = vrot.lane.b32.xlu0 %v493, 126
        %v496 = vpop.permute.xlu0 %495
        %v498 = vadd.f32 %v482, %v496
        %s499 = scalar_lea.vmem %s195, 16
        %v500 = vld [vmem:[%s499] sm:$0xf]
        %s501 = sld [smem:[#allocation2 + $0x12]]
        %v502 = vstv %s501
        %v503 = vmul.f32 %v502, %v500
        %v504 = vadd.f32 %v490, %v503
        %s505 = sld [smem:[#allocation2 + $0x5a]]
        %v506 = vstv %s505
        %v507 = vmul.f32 %v506, %v500
        %v508 = vadd.f32 %v498, %v507
        %s509 = sld [smem:[#allocation2 + $0x13]]
        %v510 = vstv %s509
        %v511 = vmul.f32 %v510, %v500
        %513 = vrot.lane.b32.xlu0 %v511, 127
        %v514 = vpop.permute.xlu0 %513
        %v516 = vadd.f32 %v504, %v514
        %s517 = sld [smem:[#allocation2 + $0x5b]]
        %v518 = vstv %s517
        %v519 = vmul.f32 %v518, %v500
        %521 = vrot.lane.b32.xlu0 %v519, 127
        %v522 = vpop.permute.xlu0 %521
        %v524 = vadd.f32 %v508, %v522
        %s525 = sld [smem:[#allocation2 + $0x14]]
        %v526 = vstv %s525
        %v527 = vmul.f32 %v526, %v500
        %529 = vrot.lane.b32.xlu0 %v527, 126
        %v530 = vpop.permute.xlu0 %529
        %v532 = vadd.f32 %v516, %v530
        %s533 = sld [smem:[#allocation2 + $0x5c]]
        %v534 = vstv %s533
        %v535 = vmul.f32 %v534, %v500
        %537 = vrot.lane.b32.xlu0 %v535, 126
        %v538 = vpop.permute.xlu0 %537
        %v540 = vadd.f32 %v524, %v538
        %v541 = vld [vmem:[%s499 + $0x1] sm:$0xf]
        %s542 = sld [smem:[#allocation2 + $0x15]]
        %v543 = vstv %s542
        %v544 = vmul.f32 %v543, %v541
        %v545 = vadd.f32 %v532, %v544
        %s546 = sld [smem:[#allocation2 + $0x5d]]
        %v547 = vstv %s546
        %v548 = vmul.f32 %v547, %v541
        %v549 = vadd.f32 %v540, %v548
        %s550 = sld [smem:[#allocation2 + $0x16]]
        %v551 = vstv %s550
        %v552 = vmul.f32 %v551, %v541
        %554 = vrot.lane.b32.xlu0 %v552, 127
        %v555 = vpop.permute.xlu0 %554
        %v557 = vadd.f32 %v545, %v555
        %s558 = sld [smem:[#allocation2 + $0x5e]]
        %v559 = vstv %s558
        %v560 = vmul.f32 %v559, %v541
        %562 = vrot.lane.b32.xlu0 %v560, 127
        %v563 = vpop.permute.xlu0 %562
        %v565 = vadd.f32 %v549, %v563
        %s566 = sld [smem:[#allocation2 + $0x17]]
        %v567 = vstv %s566
        %v568 = vmul.f32 %v567, %v541
        %570 = vrot.lane.b32.xlu0 %v568, 126
        %v571 = vpop.permute.xlu0 %570
        %v573 = vadd.f32 %v557, %v571
        %s574 = sld [smem:[#allocation2 + $0x5f]]
        %v575 = vstv %s574
        %v576 = vmul.f32 %v575, %v541
        %578 = vrot.lane.b32.xlu0 %v576, 126
        %v579 = vpop.permute.xlu0 %578
        %v581 = vadd.f32 %v565, %v579
        %v582 = vld [vmem:[%s499 + $0x2] sm:$0xf]
        %s583 = sld [smem:[#allocation2 + $0x18]]
        %v584 = vstv %s583
        %v585 = vmul.f32 %v584, %v582
        %v586 = vadd.f32 %v573, %v585
        %s587 = sld [smem:[#allocation2 + $0x60]]
        %v588 = vstv %s587
        %v589 = vmul.f32 %v588, %v582
        %v590 = vadd.f32 %v581, %v589
        %s591 = sld [smem:[#allocation2 + $0x19]]
        %v592 = vstv %s591
        %v593 = vmul.f32 %v592, %v582
        %595 = vrot.lane.b32.xlu0 %v593, 127
        %v596 = vpop.permute.xlu0 %595
        %v598 = vadd.f32 %v586, %v596
        %s599 = sld [smem:[#allocation2 + $0x61]]
        %v600 = vstv %s599
        %v601 = vmul.f32 %v600, %v582
        %603 = vrot.lane.b32.xlu0 %v601, 127
        %v604 = vpop.permute.xlu0 %603
        %v606 = vadd.f32 %v590, %v604
        %s607 = sld [smem:[#allocation2 + $0x1a]]
        %v608 = vstv %s607
        %v609 = vmul.f32 %v608, %v582
        %611 = vrot.lane.b32.xlu0 %v609, 126
        %v612 = vpop.permute.xlu0 %611
        %v614 = vadd.f32 %v598, %v612
        %s615 = sld [smem:[#allocation2 + $0x62]]
        %v616 = vstv %s615
        %v617 = vmul.f32 %v616, %v582
        %619 = vrot.lane.b32.xlu0 %v617, 126
        %v620 = vpop.permute.xlu0 %619
        %v622 = vadd.f32 %v606, %v620
        %s623 = scalar_lea.vmem %s195, 24
        %v624 = vld [vmem:[%s623] sm:$0xf]
        %s625 = sld [smem:[#allocation2 + $0x1b]]
        %v626 = vstv %s625
        %v627 = vmul.f32 %v626, %v624
        %v628 = vadd.f32 %v614, %v627
        %s629 = sld [smem:[#allocation2 + $0x63]]
        %v630 = vstv %s629
        %v631 = vmul.f32 %v630, %v624
        %v632 = vadd.f32 %v622, %v631
        %s633 = sld [smem:[#allocation2 + $0x1c]]
        %v634 = vstv %s633
        %v635 = vmul.f32 %v634, %v624
        %637 = vrot.lane.b32.xlu0 %v635, 127
        %v638 = vpop.permute.xlu0 %637
        %v640 = vadd.f32 %v628, %v638
        %s641 = sld [smem:[#allocation2 + $0x64]]
        %v642 = vstv %s641
        %v643 = vmul.f32 %v642, %v624
        %645 = vrot.lane.b32.xlu0 %v643, 127
        %v646 = vpop.permute.xlu0 %645
        %v648 = vadd.f32 %v632, %v646
        %s649 = sld [smem:[#allocation2 + $0x1d]]
        %v650 = vstv %s649
        %v651 = vmul.f32 %v650, %v624
        %653 = vrot.lane.b32.xlu0 %v651, 126
        %v654 = vpop.permute.xlu0 %653
        %v656 = vadd.f32 %v640, %v654
        %s657 = sld [smem:[#allocation2 + $0x65]]
        %v658 = vstv %s657
        %v659 = vmul.f32 %v658, %v624
        %661 = vrot.lane.b32.xlu0 %v659, 126
        %v662 = vpop.permute.xlu0 %661
        %v664 = vadd.f32 %v648, %v662
        %v665 = vld [vmem:[%s623 + $0x1] sm:$0xf]
        %s666 = sld [smem:[#allocation2 + $0x1e]]
        %v667 = vstv %s666
        %v668 = vmul.f32 %v667, %v665
        %v669 = vadd.f32 %v656, %v668
        %s670 = sld [smem:[#allocation2 + $0x66]]
        %v671 = vstv %s670
        %v672 = vmul.f32 %v671, %v665
        %v673 = vadd.f32 %v664, %v672
        %s674 = sld [smem:[#allocation2 + $0x1f]]
        %v675 = vstv %s674
        %v676 = vmul.f32 %v675, %v665
        %678 = vrot.lane.b32.xlu0 %v676, 127
        %v679 = vpop.permute.xlu0 %678
        %v681 = vadd.f32 %v669, %v679
        %s682 = sld [smem:[#allocation2 + $0x67]]
        %v683 = vstv %s682
        %v684 = vmul.f32 %v683, %v665
        %686 = vrot.lane.b32.xlu0 %v684, 127
        %v687 = vpop.permute.xlu0 %686
        %v689 = vadd.f32 %v673, %v687
        %s690 = sld [smem:[#allocation2 + $0x20]]
        %v691 = vstv %s690
        %v692 = vmul.f32 %v691, %v665
        %694 = vrot.lane.b32.xlu0 %v692, 126
        %v695 = vpop.permute.xlu0 %694
        %v697 = vadd.f32 %v681, %v695
        %s698 = sld [smem:[#allocation2 + $0x68]]
        %v699 = vstv %s698
        %v700 = vmul.f32 %v699, %v665
        %702 = vrot.lane.b32.xlu0 %v700, 126
        %v703 = vpop.permute.xlu0 %702
        %v705 = vadd.f32 %v689, %v703
        %v706 = vld [vmem:[%s623 + $0x2] sm:$0xf]
        %s707 = sld [smem:[#allocation2 + $0x21]]
        %v708 = vstv %s707
        %v709 = vmul.f32 %v708, %v706
        %v710 = vadd.f32 %v697, %v709
        %s711 = sld [smem:[#allocation2 + $0x69]]
        %v712 = vstv %s711
        %v713 = vmul.f32 %v712, %v706
        %v714 = vadd.f32 %v705, %v713
        %s715 = sld [smem:[#allocation2 + $0x22]]
        %v716 = vstv %s715
        %v717 = vmul.f32 %v716, %v706
        %719 = vrot.lane.b32.xlu0 %v717, 127
        %v720 = vpop.permute.xlu0 %719
        %v722 = vadd.f32 %v710, %v720
        %s723 = sld [smem:[#allocation2 + $0x6a]]
        %v724 = vstv %s723
        %v725 = vmul.f32 %v724, %v706
        %727 = vrot.lane.b32.xlu0 %v725, 127
        %v728 = vpop.permute.xlu0 %727
        %v730 = vadd.f32 %v714, %v728
        %s731 = sld [smem:[#allocation2 + $0x23]]
        %v732 = vstv %s731
        %v733 = vmul.f32 %v732, %v706
        %735 = vrot.lane.b32.xlu0 %v733, 126
        %v736 = vpop.permute.xlu0 %735
        %v738 = vadd.f32 %v722, %v736
        %s739 = sld [smem:[#allocation2 + $0x6b]]
        %v740 = vstv %s739
        %v741 = vmul.f32 %v740, %v706
        %743 = vrot.lane.b32.xlu0 %v741, 126
        %v744 = vpop.permute.xlu0 %743
        %v746 = vadd.f32 %v730, %v744
        %s747 = scalar_lea.vmem %s195, 32
        %v748 = vld [vmem:[%s747] sm:$0xf]
        %s749 = sld [smem:[#allocation2 + $0x24]]
        %v750 = vstv %s749
        %v751 = vmul.f32 %v750, %v748
        %v752 = vadd.f32 %v738, %v751
        %s753 = sld [smem:[#allocation2 + $0x6c]]
        %v754 = vstv %s753
        %v755 = vmul.f32 %v754, %v748
        %v756 = vadd.f32 %v746, %v755
        %s757 = sld [smem:[#allocation2 + $0x25]]
        %v758 = vstv %s757
        %v759 = vmul.f32 %v758, %v748
        %761 = vrot.lane.b32.xlu0 %v759, 127
        %v762 = vpop.permute.xlu0 %761
        %v764 = vadd.f32 %v752, %v762
        %s765 = sld [smem:[#allocation2 + $0x6d]]
        %v766 = vstv %s765
        %v767 = vmul.f32 %v766, %v748
        %769 = vrot.lane.b32.xlu0 %v767, 127
        %v770 = vpop.permute.xlu0 %769
        %v772 = vadd.f32 %v756, %v770
        %s773 = sld [smem:[#allocation2 + $0x26]]
        %v774 = vstv %s773
        %v775 = vmul.f32 %v774, %v748
        %777 = vrot.lane.b32.xlu0 %v775, 126
        %v778 = vpop.permute.xlu0 %777
        %v780 = vadd.f32 %v764, %v778
        %s781 = sld [smem:[#allocation2 + $0x6e]]
        %v782 = vstv %s781
        %v783 = vmul.f32 %v782, %v748
        %785 = vrot.lane.b32.xlu0 %v783, 126
        %v786 = vpop.permute.xlu0 %785
        %v788 = vadd.f32 %v772, %v786
        %v789 = vld [vmem:[%s747 + $0x1] sm:$0xf]
        %s790 = sld [smem:[#allocation2 + $0x27]]
        %v791 = vstv %s790
        %v792 = vmul.f32 %v791, %v789
        %v793 = vadd.f32 %v780, %v792
        %s794 = sld [smem:[#allocation2 + $0x6f]]
        %v795 = vstv %s794
        %v796 = vmul.f32 %v795, %v789
        %v797 = vadd.f32 %v788, %v796
        %s798 = sld [smem:[#allocation2 + $0x28]]
        %v799 = vstv %s798
        %v800 = vmul.f32 %v799, %v789
        %802 = vrot.lane.b32.xlu0 %v800, 127
        %v803 = vpop.permute.xlu0 %802
        %v805 = vadd.f32 %v793, %v803
        %s806 = sld [smem:[#allocation2 + $0x70]]
        %v807 = vstv %s806
        %v808 = vmul.f32 %v807, %v789
        %810 = vrot.lane.b32.xlu0 %v808, 127
        %v811 = vpop.permute.xlu0 %810
        %v813 = vadd.f32 %v797, %v811
        %s814 = sld [smem:[#allocation2 + $0x29]]
        %v815 = vstv %s814
        %v816 = vmul.f32 %v815, %v789
        %818 = vrot.lane.b32.xlu0 %v816, 126
        %v819 = vpop.permute.xlu0 %818
        %v821 = vadd.f32 %v805, %v819
        %s822 = sld [smem:[#allocation2 + $0x71]]
        %v823 = vstv %s822
        %v824 = vmul.f32 %v823, %v789
        %826 = vrot.lane.b32.xlu0 %v824, 126
        %v827 = vpop.permute.xlu0 %826
        %v829 = vadd.f32 %v813, %v827
        %v830 = vld [vmem:[%s747 + $0x2] sm:$0xf]
        %s831 = sld [smem:[#allocation2 + $0x2a]]
        %v832 = vstv %s831
        %v833 = vmul.f32 %v832, %v830
        %v834 = vadd.f32 %v821, %v833
        %s835 = sld [smem:[#allocation2 + $0x72]]
        %v836 = vstv %s835
        %v837 = vmul.f32 %v836, %v830
        %v838 = vadd.f32 %v829, %v837
        %s839 = sld [smem:[#allocation2 + $0x2b]]
        %v840 = vstv %s839
        %v841 = vmul.f32 %v840, %v830
        %843 = vrot.lane.b32.xlu0 %v841, 127
        %v844 = vpop.permute.xlu0 %843
        %v846 = vadd.f32 %v834, %v844
        %s847 = sld [smem:[#allocation2 + $0x73]]
        %v848 = vstv %s847
        %v849 = vmul.f32 %v848, %v830
        %851 = vrot.lane.b32.xlu0 %v849, 127
        %v852 = vpop.permute.xlu0 %851
        %v854 = vadd.f32 %v838, %v852
        %s855 = sld [smem:[#allocation2 + $0x2c]]
        %v856 = vstv %s855
        %v857 = vmul.f32 %v856, %v830
        %859 = vrot.lane.b32.xlu0 %v857, 126
        %v860 = vpop.permute.xlu0 %859
        %v862 = vadd.f32 %v846, %v860
        %s863 = sld [smem:[#allocation2 + $0x74]]
        %v864 = vstv %s863
        %v865 = vmul.f32 %v864, %v830
        %867 = vrot.lane.b32.xlu0 %v865, 126
        %v868 = vpop.permute.xlu0 %867
        %v870 = vadd.f32 %v854, %v868
        %s871 = scalar_lea.vmem %s195, 40
        %v872 = vld [vmem:[%s871] sm:$0xf]
        %s873 = sld [smem:[#allocation2 + $0x2d]]
        %v874 = vstv %s873
        %v875 = vmul.f32 %v874, %v872
        %v876 = vadd.f32 %v862, %v875
        %s877 = sld [smem:[#allocation2 + $0x75]]
        %v878 = vstv %s877
        %v879 = vmul.f32 %v878, %v872
        %v880 = vadd.f32 %v870, %v879
        %s881 = sld [smem:[#allocation2 + $0x2e]]
        %v882 = vstv %s881
        %v883 = vmul.f32 %v882, %v872
        %885 = vrot.lane.b32.xlu0 %v883, 127
        %v886 = vpop.permute.xlu0 %885
        %v888 = vadd.f32 %v876, %v886
        %s889 = sld [smem:[#allocation2 + $0x76]]
        %v890 = vstv %s889
        %v891 = vmul.f32 %v890, %v872
        %893 = vrot.lane.b32.xlu0 %v891, 127
        %v894 = vpop.permute.xlu0 %893
        %v896 = vadd.f32 %v880, %v894
        %s897 = sld [smem:[#allocation2 + $0x2f]]
        %v898 = vstv %s897
        %v899 = vmul.f32 %v898, %v872
        %901 = vrot.lane.b32.xlu0 %v899, 126
        %v902 = vpop.permute.xlu0 %901
        %v904 = vadd.f32 %v888, %v902
        %s905 = sld [smem:[#allocation2 + $0x77]]
        %v906 = vstv %s905
        %v907 = vmul.f32 %v906, %v872
        %909 = vrot.lane.b32.xlu0 %v907, 126
        %v910 = vpop.permute.xlu0 %909
        %v912 = vadd.f32 %v896, %v910
        %v913 = vld [vmem:[%s871 + $0x1] sm:$0xf]
        %s914 = sld [smem:[#allocation2 + $0x30]]
        %v915 = vstv %s914
        %v916 = vmul.f32 %v915, %v913
        %v917 = vadd.f32 %v904, %v916
        %s918 = sld [smem:[#allocation2 + $0x78]]
        %v919 = vstv %s918
        %v920 = vmul.f32 %v919, %v913
        %v921 = vadd.f32 %v912, %v920
        %s922 = sld [smem:[#allocation2 + $0x31]]
        %v923 = vstv %s922
        %v924 = vmul.f32 %v923, %v913
        %926 = vrot.lane.b32.xlu0 %v924, 127
        %v927 = vpop.permute.xlu0 %926
        %v929 = vadd.f32 %v917, %v927
        %s930 = sld [smem:[#allocation2 + $0x79]]
        %v931 = vstv %s930
        %v932 = vmul.f32 %v931, %v913
        %934 = vrot.lane.b32.xlu0 %v932, 127
        %v935 = vpop.permute.xlu0 %934
        %v937 = vadd.f32 %v921, %v935
        %s938 = sld [smem:[#allocation2 + $0x32]]
        %v939 = vstv %s938
        %v940 = vmul.f32 %v939, %v913
        %942 = vrot.lane.b32.xlu0 %v940, 126
        %v943 = vpop.permute.xlu0 %942
        %v945 = vadd.f32 %v929, %v943
        %s946 = sld [smem:[#allocation2 + $0x7a]]
        %v947 = vstv %s946
        %v948 = vmul.f32 %v947, %v913
        %950 = vrot.lane.b32.xlu0 %v948, 126
        %v951 = vpop.permute.xlu0 %950
        %v953 = vadd.f32 %v937, %v951
        %v954 = vld [vmem:[%s871 + $0x2] sm:$0xf]
        %s955 = sld [smem:[#allocation2 + $0x33]]
        %v956 = vstv %s955
        %v957 = vmul.f32 %v956, %v954
        %v958 = vadd.f32 %v945, %v957
        %s959 = sld [smem:[#allocation2 + $0x7b]]
        %v960 = vstv %s959
        %v961 = vmul.f32 %v960, %v954
        %v962 = vadd.f32 %v953, %v961
        %s963 = sld [smem:[#allocation2 + $0x34]]
        %v964 = vstv %s963
        %v965 = vmul.f32 %v964, %v954
        %967 = vrot.lane.b32.xlu0 %v965, 127
        %v968 = vpop.permute.xlu0 %967
        %v970 = vadd.f32 %v958, %v968
        %s971 = sld [smem:[#allocation2 + $0x7c]]
        %v972 = vstv %s971
        %v973 = vmul.f32 %v972, %v954
        %975 = vrot.lane.b32.xlu0 %v973, 127
        %v976 = vpop.permute.xlu0 %975
        %v978 = vadd.f32 %v962, %v976
        %s979 = sld [smem:[#allocation2 + $0x35]]
        %v980 = vstv %s979
        %v981 = vmul.f32 %v980, %v954
        %983 = vrot.lane.b32.xlu0 %v981, 126
        %v984 = vpop.permute.xlu0 %983
        %v986 = vadd.f32 %v970, %v984
        %s987 = sld [smem:[#allocation2 + $0x7d]]
        %v988 = vstv %s987
        %v989 = vmul.f32 %v988, %v954
        %991 = vrot.lane.b32.xlu0 %v989, 126
        %v992 = vpop.permute.xlu0 %991
        %v994 = vadd.f32 %v978, %v992
        %s995 = scalar_lea.vmem %s195, 48
        %v996 = vld [vmem:[%s995] sm:$0xf]
        %s997 = sld [smem:[#allocation2 + $0x36]]
        %v998 = vstv %s997
        %v999 = vmul.f32 %v998, %v996
        %v1000 = vadd.f32 %v986, %v999
        %s1001 = sld [smem:[#allocation2 + $0x7e]]
        %v1002 = vstv %s1001
        %v1003 = vmul.f32 %v1002, %v996
        %v1004 = vadd.f32 %v994, %v1003
        %s1005 = sld [smem:[#allocation2 + $0x37]]
        %v1006 = vstv %s1005
        %v1007 = vmul.f32 %v1006, %v996
        %1009 = vrot.lane.b32.xlu0 %v1007, 127
        %v1010 = vpop.permute.xlu0 %1009
        %v1012 = vadd.f32 %v1000, %v1010
        %s1013 = sld [smem:[#allocation2 + $0x7f]]
        %v1014 = vstv %s1013
        %v1015 = vmul.f32 %v1014, %v996
        %1017 = vrot.lane.b32.xlu0 %v1015, 127
        %v1018 = vpop.permute.xlu0 %1017
        %v1020 = vadd.f32 %v1004, %v1018
        %s1021 = sld [smem:[#allocation2 + $0x38]]
        %v1022 = vstv %s1021
        %v1023 = vmul.f32 %v1022, %v996
        %1025 = vrot.lane.b32.xlu0 %v1023, 126
        %v1026 = vpop.permute.xlu0 %1025
        %v1028 = vadd.f32 %v1012, %v1026
        %s1029 = sld [smem:[#allocation2 + $0x80]]
        %v1030 = vstv %s1029
        %v1031 = vmul.f32 %v1030, %v996
        %1033 = vrot.lane.b32.xlu0 %v1031, 126
        %v1034 = vpop.permute.xlu0 %1033
        %v1036 = vadd.f32 %v1020, %v1034
        %v1037 = vld [vmem:[%s995 + $0x1] sm:$0xf]
        %s1038 = sld [smem:[#allocation2 + $0x39]]
        %v1039 = vstv %s1038
        %v1040 = vmul.f32 %v1039, %v1037
        %v1041 = vadd.f32 %v1028, %v1040
        %s1042 = sld [smem:[#allocation2 + $0x81]]
        %v1043 = vstv %s1042
        %v1044 = vmul.f32 %v1043, %v1037
        %v1045 = vadd.f32 %v1036, %v1044
        %s1046 = sld [smem:[#allocation2 + $0x3a]]
        %v1047 = vstv %s1046
        %v1048 = vmul.f32 %v1047, %v1037
        %1050 = vrot.lane.b32.xlu0 %v1048, 127
        %v1051 = vpop.permute.xlu0 %1050
        %v1053 = vadd.f32 %v1041, %v1051
        %s1054 = sld [smem:[#allocation2 + $0x82]]
        %v1055 = vstv %s1054
        %v1056 = vmul.f32 %v1055, %v1037
        %1058 = vrot.lane.b32.xlu0 %v1056, 127
        %v1059 = vpop.permute.xlu0 %1058
        %v1061 = vadd.f32 %v1045, %v1059
        %s1062 = sld [smem:[#allocation2 + $0x3b]]
        %v1063 = vstv %s1062
        %v1064 = vmul.f32 %v1063, %v1037
        %1066 = vrot.lane.b32.xlu0 %v1064, 126
        %v1067 = vpop.permute.xlu0 %1066
        %v1069 = vadd.f32 %v1053, %v1067
        %s1070 = sld [smem:[#allocation2 + $0x83]]
        %v1071 = vstv %s1070
        %v1072 = vmul.f32 %v1071, %v1037
        %1074 = vrot.lane.b32.xlu0 %v1072, 126
        %v1075 = vpop.permute.xlu0 %1074
        %v1077 = vadd.f32 %v1061, %v1075
        %v1078 = vld [vmem:[%s995 + $0x2] sm:$0xf]
        %s1079 = sld [smem:[#allocation2 + $0x3c]]
        %v1080 = vstv %s1079
        %v1081 = vmul.f32 %v1080, %v1078
        %v1082 = vadd.f32 %v1069, %v1081
        %s1083 = sld [smem:[#allocation2 + $0x84]]
        %v1084 = vstv %s1083
        %v1085 = vmul.f32 %v1084, %v1078
        %v1086 = vadd.f32 %v1077, %v1085
        %s1087 = sld [smem:[#allocation2 + $0x3d]]
        %v1088 = vstv %s1087
        %v1089 = vmul.f32 %v1088, %v1078
        %1091 = vrot.lane.b32.xlu0 %v1089, 127
        %v1092 = vpop.permute.xlu0 %1091
        %v1094 = vadd.f32 %v1082, %v1092
        %s1095 = sld [smem:[#allocation2 + $0x85]]
        %v1096 = vstv %s1095
        %v1097 = vmul.f32 %v1096, %v1078
        %1099 = vrot.lane.b32.xlu0 %v1097, 127
        %v1100 = vpop.permute.xlu0 %1099
        %v1102 = vadd.f32 %v1086, %v1100
        %s1103 = sld [smem:[#allocation2 + $0x3e]]
        %v1104 = vstv %s1103
        %v1105 = vmul.f32 %v1104, %v1078
        %1107 = vrot.lane.b32.xlu0 %v1105, 126
        %v1108 = vpop.permute.xlu0 %1107
        %v1110 = vadd.f32 %v1094, %v1108
        %s1111 = sld [smem:[#allocation2 + $0x86]]
        %v1112 = vstv %s1111
        %v1113 = vmul.f32 %v1112, %v1078
        %1115 = vrot.lane.b32.xlu0 %v1113, 126
        %v1116 = vpop.permute.xlu0 %1115
        %v1118 = vadd.f32 %v1102, %v1116
        %s1119 = scalar_lea.vmem %s195, 56
        %v1120 = vld [vmem:[%s1119] sm:$0xf]
        %s1121 = sld [smem:[#allocation2 + $0x3f]]
        %v1122 = vstv %s1121
        %v1123 = vmul.f32 %v1122, %v1120
        %v1124 = vadd.f32 %v1110, %v1123
        %s1125 = sld [smem:[#allocation2 + $0x87]]
        %v1126 = vstv %s1125
        %v1127 = vmul.f32 %v1126, %v1120
        %v1128 = vadd.f32 %v1118, %v1127
        %s1129 = sld [smem:[#allocation2 + $0x40]]
        %v1130 = vstv %s1129
        %v1131 = vmul.f32 %v1130, %v1120
        %1133 = vrot.lane.b32.xlu0 %v1131, 127
        %v1134 = vpop.permute.xlu0 %1133
        %v1136 = vadd.f32 %v1124, %v1134
        %s1137 = sld [smem:[#allocation2 + $0x88]]
        %v1138 = vstv %s1137
        %v1139 = vmul.f32 %v1138, %v1120
        %1141 = vrot.lane.b32.xlu0 %v1139, 127
        %v1142 = vpop.permute.xlu0 %1141
        %v1144 = vadd.f32 %v1128, %v1142
        %s1145 = sld [smem:[#allocation2 + $0x41]]
        %v1146 = vstv %s1145
        %v1147 = vmul.f32 %v1146, %v1120
        %1149 = vrot.lane.b32.xlu0 %v1147, 126
        %v1150 = vpop.permute.xlu0 %1149
        %v1152 = vadd.f32 %v1136, %v1150
        %s1153 = sld [smem:[#allocation2 + $0x89]]
        %v1154 = vstv %s1153
        %v1155 = vmul.f32 %v1154, %v1120
        %1157 = vrot.lane.b32.xlu0 %v1155, 126
        %v1158 = vpop.permute.xlu0 %1157
        %v1160 = vadd.f32 %v1144, %v1158
        %v1161 = vld [vmem:[%s1119 + $0x1] sm:$0xf]
        %s1162 = sld [smem:[#allocation2 + $0x42]]
        %v1163 = vstv %s1162
        %v1164 = vmul.f32 %v1163, %v1161
        %v1165 = vadd.f32 %v1152, %v1164
        %s1166 = sld [smem:[#allocation2 + $0x8a]]
        %v1167 = vstv %s1166
        %v1168 = vmul.f32 %v1167, %v1161
        %v1169 = vadd.f32 %v1160, %v1168
        %s1170 = sld [smem:[#allocation2 + $0x43]]
        %v1171 = vstv %s1170
        %v1172 = vmul.f32 %v1171, %v1161
        %1174 = vrot.lane.b32.xlu0 %v1172, 127
        %v1175 = vpop.permute.xlu0 %1174
        %v1177 = vadd.f32 %v1165, %v1175
        %s1178 = sld [smem:[#allocation2 + $0x8b]]
        %v1179 = vstv %s1178
        %v1180 = vmul.f32 %v1179, %v1161
        %1182 = vrot.lane.b32.xlu0 %v1180, 127
        %v1183 = vpop.permute.xlu0 %1182
        %v1185 = vadd.f32 %v1169, %v1183
        %s1186 = sld [smem:[#allocation2 + $0x44]]
        %v1187 = vstv %s1186
        %v1188 = vmul.f32 %v1187, %v1161
        %1190 = vrot.lane.b32.xlu0 %v1188, 126
        %v1191 = vpop.permute.xlu0 %1190
        %v1193 = vadd.f32 %v1177, %v1191
        %s1194 = sld [smem:[#allocation2 + $0x8c]]
        %v1195 = vstv %s1194
        %v1196 = vmul.f32 %v1195, %v1161
        %1198 = vrot.lane.b32.xlu0 %v1196, 126
        %v1199 = vpop.permute.xlu0 %1198
        %v1201 = vadd.f32 %v1185, %v1199
        %v1202 = vld [vmem:[%s1119 + $0x2] sm:$0xf]
        %s1203 = sld [smem:[#allocation2 + $0x45]]
        %v1204 = vstv %s1203
        %v1205 = vmul.f32 %v1204, %v1202
        %v1206 = vadd.f32 %v1193, %v1205
        %s1207 = sld [smem:[#allocation2 + $0x8d]]
        %v1208 = vstv %s1207
        %v1209 = vmul.f32 %v1208, %v1202
        %v1210 = vadd.f32 %v1201, %v1209
        %s1211 = sld [smem:[#allocation2 + $0x46]]
        %v1212 = vstv %s1211
        %v1213 = vmul.f32 %v1212, %v1202
        %1215 = vrot.lane.b32.xlu0 %v1213, 127
        %v1216 = vpop.permute.xlu0 %1215
        %v1218 = vadd.f32 %v1206, %v1216
        %s1219 = sld [smem:[#allocation2 + $0x8e]]
        %v1220 = vstv %s1219
        %v1221 = vmul.f32 %v1220, %v1202
        %1223 = vrot.lane.b32.xlu0 %v1221, 127
        %v1224 = vpop.permute.xlu0 %1223
        %v1226 = vadd.f32 %v1210, %v1224
        %s1227 = sld [smem:[#allocation2 + $0x47]]
        %v1228 = vstv %s1227
        %v1229 = vmul.f32 %v1228, %v1202
        %1231 = vrot.lane.b32.xlu0 %v1229, 126
        %v1232 = vpop.permute.xlu0 %1231
        %v1234 = vadd.f32 %v1218, %v1232
        %s1235 = sld [smem:[#allocation2 + $0x8f]]
        %v1236 = vstv %s1235
        %v1237 = vmul.f32 %v1236, %v1202
        %1239 = vrot.lane.b32.xlu0 %v1237, 126
        %v1240 = vpop.permute.xlu0 %1239
        %v1242 = vadd.f32 %v1226, %v1240
        %v1243 = vmax.f32 %v1234, 0.0
        %v1244 = vsel %vm225, %v1243, -inf
        %1245 = vmax.xlane.f32.xlu0 %v1244
        %v1246 = vpop.xlane.xlu0 %1245
        %vm1247 = vcmask 1043456
        %v1248 = vsel %vm1247, %v1246, -inf
        %v1249 = vrot.slane %v1248, 4
        %v1250 = vmax.f32 %v1248, %v1249
        %v1251 = vrot.slane %v1250, 2
        %v1252 = vmax.f32 %v1250, %v1251
        %v1253 = vrot.slane %v1252, 1
        %v1254 = vmax.f32 %v1252, %v1253
        %v1255 = vsel %vm225, %v1243, inf
        %1256 = vmin.xlane.f32.xlu0 %v1255
        %v1257 = vpop.xlane.xlu0 %1256
        %v1258 = vsel %vm1247, %v1257, inf
        %v1259 = vrot.slane %v1258, 4
        %v1260 = vmin.f32 %v1258, %v1259
        %v1261 = vrot.slane %v1260, 2
        %v1262 = vmin.f32 %v1260, %v1261
        %v1263 = vrot.slane %v1262, 1
        %v1264 = vmin.f32 %v1262, %v1263
        %v1265 = vsub.f32 %v1243, %v1264
        %v1266 = vsub.f32 %v1254, %v1264
        %v1267 = vadd.f32 %v1266, 1e-07
        %v1268 = vrcp.pop %v1267
        %v1269 = vmul.f32 %v1267, %v1268
        %v1270 = vsub.f32 1.0, %v1269
        %v1271 = vmul.f32 %v1268, %v1270
        %v1272 = vadd.f32 %v1268, %v1271
        %vm1273 = vweird.f32 %v1267
        %vm1274 = vweird.f32 %v1268
        %vm1275 = vmor %vm1273, %vm1274
        %v1276 = vsel %vm1275, %v1268, %v1272
        %v1277 = vand.u32 2147483647, %v1267
        %vm1278 = vcmp.eq.f32.partialorder %v1277, 8.507059e+37
        %v1279 = vand.u32 %v1267, 2147483648
        %v1280 = vor.u32 1.1754944e-38, %v1279
        %v1281 = vsel %vm1278, %v1280, %v1276
        %v1282 = vmul.f32 %v1265, %v1281
        %1284 = vrot.lane.b32.xlu0 %v245, 127
        %v1285 = vpop.permute.xlu0 %1284
        %v1287 = vsub.f32 %v1282, %v1285
        %v1288 = vmul.f32 %v1287, 1.5707964
        %v1289 = vand.u32 2147483647, %v1288
        %vm1290 = vcmp.le.f32.partialorder %v1289, 0.7853982
        %vm1291 = vcmp.lt.s32.totalorder %v1288, 0
        %v1292 = vand.u32 %v1288, 2139095040
        %v1293 = vshrl.u32 %v1292, 23
        %v1294 = vsub.s32 %v1293, 127
        %v1295 = vand.u32 2147483647, %v1288
        %v1296 = vand.u32 %v1295, 8388607
        %v1297 = vor.u32 %v1296, 8388608
        %v1298 = vsub.s32 0, %v1297
        %v1299 = vadd.s32 %v1294, 1
        %vm1300 = vcmp.gt.s32.totalorder %v1299, 0
        %v1301 = vsel %vm1300, %v1299, 0
        %v1302 = vshrl.u32 %v1301, 5
        %v1303 = vand.u32 %v1301, 31
        %v1304 = vsub.s32 32, %v1303
        %v1305 = vshrl.u32 683565275, %v1304
        %v1306 = vshll.u32 683565275, %v1303
        %v1307 = vshrl.u32 2475754826, %v1304
        %v1308 = vor.u32 %v1306, %v1307
        %v1309 = vshll.u32 2475754826, %v1303
        %v1310 = vshrl.u32 2131351028, %v1304
        %v1311 = vor.u32 %v1309, %v1310
        %v1312 = vshll.u32 2131351028, %v1303
        %v1313 = vshrl.u32 2102212464, %v1304
        %v1314 = vor.u32 %v1312, %v1313
        %v1315 = vshll.u32 2102212464, %v1303
        %v1316 = vshrl.u32 920167782, %v1304
        %v1317 = vor.u32 %v1315, %v1316
        %v1318 = vshll.u32 920167782, %v1303
        %v1319 = vshrl.u32 1326507024, %v1304
        %v1320 = vor.u32 %v1318, %v1319
        %vm1321 = vcmp.lt.s32.totalorder %v1302, 1
        %vm1322 = vcmp.lt.s32.totalorder %v1302, 2
        %vm1323 = vcmp.lt.s32.totalorder %v1302, 3
        %vm1324 = vcmp.lt.s32.totalorder %v1302, 4
        %v1325 = vsel %vm1321, %v1305, %v1308
        %v1326 = vsel %vm1324, %v1314, 2102212464
        %v1327 = vsel %vm1323, %v1311, %v1326
        %v1328 = vsel %vm1322, %v1325, %v1327
        %v1329 = vsel %vm1321, %v1308, %v1311
        %v1330 = vsel %vm1324, %v1317, 920167782
        %v1331 = vsel %vm1323, %v1314, %v1330
        %v1332 = vsel %vm1322, %v1329, %v1331
        %v1333 = vsel %vm1321, %v1311, %v1314
        %v1334 = vsel %vm1324, %v1320, 1326507024
        %v1335 = vsel %vm1323, %v1317, %v1334
        %v1336 = vsel %vm1322, %v1333, %v1335
        %v1337 = vshll.u32 %v1297, 8
        %v1338 = vand.u32 %v1337, 65535
        %v1339 = vshrl.u32 %v1337, 16
        %v1340 = vand.u32 %v1336, 65535
        %v1341 = vshrl.u32 %v1336, 16
        %v1342 = vmul.u32 %v1338, %v1340
        %v1343 = vmul.u32 %v1338, %v1341
        %v1344 = vmul.u32 %v1339, %v1340
        %v1345 = vmul.u32 %v1339, %v1341
        %v1346 = vshll.u32 %v1343, 16
        %v1347 = vshrl.u32 %v1343, 16
        %v1348 = vshll.u32 %v1344, 16
        %v1349 = vshrl.u32 %v1344, 16
        %vm1350 = vc.u32 %v1342, %v1346
        %v1351 = vsel %vm1350, 1, 0
        %v1352 = vadd.s32 %v1342, %v1346
        %v1353 = vadd.s32 %v1345, %v1351
        %vm1354 = vc.u32 %v1352, %v1348
        %v1355 = vsel %vm1354, 1, 0
        %v1356 = vadd.s32 %v1352, %v1348
        %v1357 = vadd.s32 %v1353, %v1355
        %v1358 = vadd.s32 %v1357, %v1347
        %v1359 = vadd.s32 %v1358, %v1349
        %v1360 = vand.u32 %v1337, 65535
        %v1361 = vshrl.u32 %v1337, 16
        %v1362 = vand.u32 %v1332, 65535
        %v1363 = vshrl.u32 %v1332, 16
        %v1364 = vmul.u32 %v1360, %v1362
        %v1365 = vmul.u32 %v1360, %v1363
        %v1366 = vmul.u32 %v1361, %v1362
        %v1367 = vmul.u32 %v1361, %v1363
        %v1368 = vshll.u32 %v1365, 16
        %v1369 = vshrl.u32 %v1365, 16
        %v1370 = vshll.u32 %v1366, 16
        %v1371 = vshrl.u32 %v1366, 16
        %vm1372 = vc.u32 %v1364, %v1368
        %v1373 = vsel %vm1372, 1, 0
        %v1374 = vadd.s32 %v1364, %v1368
        %v1375 = vadd.s32 %v1367, %v1373
        %vm1376 = vc.u32 %v1374, %v1370
        %v1377 = vsel %vm1376, 1, 0
        %v1378 = vadd.s32 %v1374, %v1370
        %v1379 = vadd.s32 %v1375, %v1377
        %v1380 = vadd.s32 %v1379, %v1369
        %v1381 = vadd.s32 %v1380, %v1371
        %v1382 = vmul.u32 %v1337, %v1328
        %v1383 = vadd.s32 %v1359, %v1378
        %vm1384 = vc.u32 %v1359, %v1378
        %v1385 = vadd.s32 %v1381, 1
        %v1386 = vsel %vm1384, %v1385, %v1381
        %v1387 = vadd.s32 %v1382, %v1386
        %v1388 = vadd.s32 %v1387, 536870912
        %v1389 = vshrl.u32 %v1388, 30
        %v1390 = vshll.u32 %v1389, 30
        %v1391 = vsub.s32 %v1387, %v1390
        %vm1392 = vcmp.lt.s32.totalorder %v1391, 0
        %v1393 = vsub.s32 0, %v1391
        %v1394 = vsel %vm1392, %v1393, %v1391
        %v1395 = vclz %v1394
        %v1396 = vsub.s32 %v1395, 2
        %vm1397 = vcmp.gt.s32.totalorder 0, %v1396
        %v1398 = vsel %vm1397, 0, %v1396
        %v1399 = vsub.s32 32, %v1398
        %v1400 = vshll.u32 %v1391, %v1398
        %v1401 = vshrl.u32 %v1383, %v1399
        %v1402 = vor.u32 %v1400, %v1401
        %v1403 = vsub.s32 4294967266, %v1398
        %v1404 = vadd.s32 %v1403, 127
        %v1405 = vshll.u32 %v1404, 23
        %v1406 = vor.u32 4788187, %v1405
        %v1407 = vand.u32 2147483647, %v1406
        %v1409 = vcvt.s32.f32 %v1402
        %v1410 = vmul.f32 %v1409, %v1407
        %v1411 = vxor.u32 %v1410, 2147483648
        %v1412 = vsel %vm1291, %v1411, %v1410
        %v1413 = vsub.s32 4, %v1389
        %v1414 = vsel %vm1291, %v1413, %v1389
        %v1415 = vsel %vm1290, %v1288, %v1412
        %v1416 = vsel %vm1290, 0, %v1414
        %v1417 = vmul.f32 %v1415, %v1415
        %v1418 = vmul.f32 %v1417, -0.001358992
        %v1419 = vadd.f32 %v1418, 0.041655596
        %v1420 = vmul.f32 %v1417, %v1419
        %v1421 = vadd.f32 %v1420, -0.4999988
        %v1422 = vmul.f32 %v1417, %v1421
        %v1423 = vadd.f32 1.0, %v1422
        %v1424 = vmul.f32 %v1415, %v1415
        %v1425 = vmul.f32 %v1424, -0.00019511016
        %v1426 = vadd.f32 %v1425, 0.008332121
        %v1427 = vmul.f32 %v1424, %v1426
        %v1428 = vadd.f32 %v1427, -0.16666654
        %v1429 = vmul.f32 %v1424, %v1428
        %v1430 = vadd.f32 %v1429, 1.0
        %v1431 = vmul.f32 %v1430, %v1415
        %vm1432 = vweird.f32 %v1288
        %v1433 = vand.u32 %v1416, 3
        %vm1434 = vcmp.lt.s32.totalorder %v1433, 2
        %vm1435 = vcmp.eq.s32.totalorder %v1433, 0
        %v1436 = vxor.u32 %v1431, 2147483648
        %v1437 = vsel %vm1435, %v1423, %v1436
        %vm1438 = vcmp.eq.s32.totalorder %v1433, 2
        %v1439 = vxor.u32 %v1423, 2147483648
        %v1440 = vsel %vm1438, %v1439, %v1431
        %v1441 = vsel %vm1434, %v1437, %v1440
        %v1442 = vsel %vm1432, nan, %v1441
        %1443 = vst.msk [vmem:[%s190] sm:$0xf] %vm225, %v1442
        %v1444 = vmax.f32 %v1242, 0.0
        %v1445 = vsel %vm225, %v1444, -inf
        %1446 = vmax.xlane.f32.xlu0 %v1445
        %v1447 = vpop.xlane.xlu0 %1446
        %v1448 = vsel %vm1247, %v1447, -inf
        %v1449 = vrot.slane %v1448, 4
        %v1450 = vmax.f32 %v1448, %v1449
        %v1451 = vrot.slane %v1450, 2
        %v1452 = vmax.f32 %v1450, %v1451
        %v1453 = vrot.slane %v1452, 1
        %v1454 = vmax.f32 %v1452, %v1453
        %v1455 = vsel %vm225, %v1444, inf
        %1456 = vmin.xlane.f32.xlu0 %v1455
        %v1457 = vpop.xlane.xlu0 %1456
        %v1458 = vsel %vm1247, %v1457, inf
        %v1459 = vrot.slane %v1458, 4
        %v1460 = vmin.f32 %v1458, %v1459
        %v1461 = vrot.slane %v1460, 2
        %v1462 = vmin.f32 %v1460, %v1461
        %v1463 = vrot.slane %v1462, 1
        %v1464 = vmin.f32 %v1462, %v1463
        %v1465 = vsub.f32 %v1444, %v1464
        %v1466 = vsub.f32 %v1454, %v1464
        %v1467 = vadd.f32 %v1466, 1e-07
        %v1468 = vrcp.pop %v1467
        %v1469 = vmul.f32 %v1467, %v1468
        %v1470 = vsub.f32 1.0, %v1469
        %v1471 = vmul.f32 %v1468, %v1470
        %v1472 = vadd.f32 %v1468, %v1471
        %vm1473 = vweird.f32 %v1467
        %vm1474 = vweird.f32 %v1468
        %vm1475 = vmor %vm1473, %vm1474
        %v1476 = vsel %vm1475, %v1468, %v1472
        %v1477 = vand.u32 2147483647, %v1467
        %vm1478 = vcmp.eq.f32.partialorder %v1477, 8.507059e+37
        %v1479 = vand.u32 %v1467, 2147483648
        %v1480 = vor.u32 1.1754944e-38, %v1479
        %v1481 = vsel %vm1478, %v1480, %v1476
        %v1482 = vmul.f32 %v1465, %v1481
        %v1483 = vsub.f32 %v1482, %v1285
        %v1484 = vmul.f32 %v1483, 1.5707964
        %v1485 = vand.u32 2147483647, %v1484
        %vm1486 = vcmp.le.f32.partialorder %v1485, 0.7853982
        %vm1487 = vcmp.lt.s32.totalorder %v1484, 0
        %v1488 = vand.u32 %v1484, 2139095040
        %v1489 = vshrl.u32 %v1488, 23
        %v1490 = vsub.s32 %v1489, 127
        %v1491 = vand.u32 2147483647, %v1484
        %v1492 = vand.u32 %v1491, 8388607
        %v1493 = vor.u32 %v1492, 8388608
        %v1494 = vsub.s32 0, %v1493
        %v1495 = vadd.s32 %v1490, 1
        %vm1496 = vcmp.gt.s32.totalorder %v1495, 0
        %v1497 = vsel %vm1496, %v1495, 0
        %v1498 = vshrl.u32 %v1497, 5
        %v1499 = vand.u32 %v1497, 31
        %v1500 = vsub.s32 32, %v1499
        %v1501 = vshrl.u32 683565275, %v1500
        %v1502 = vshll.u32 683565275, %v1499
        %v1503 = vshrl.u32 2475754826, %v1500
        %v1504 = vor.u32 %v1502, %v1503
        %v1505 = vshll.u32 2475754826, %v1499
        %v1506 = vshrl.u32 2131351028, %v1500
        %v1507 = vor.u32 %v1505, %v1506
        %v1508 = vshll.u32 2131351028, %v1499
        %v1509 = vshrl.u32 2102212464, %v1500
        %v1510 = vor.u32 %v1508, %v1509
        %v1511 = vshll.u32 2102212464, %v1499
        %v1512 = vshrl.u32 920167782, %v1500
        %v1513 = vor.u32 %v1511, %v1512
        %v1514 = vshll.u32 920167782, %v1499
        %v1515 = vshrl.u32 1326507024, %v1500
        %v1516 = vor.u32 %v1514, %v1515
        %vm1517 = vcmp.lt.s32.totalorder %v1498, 1
        %vm1518 = vcmp.lt.s32.totalorder %v1498, 2
        %vm1519 = vcmp.lt.s32.totalorder %v1498, 3
        %vm1520 = vcmp.lt.s32.totalorder %v1498, 4
        %v1521 = vsel %vm1517, %v1501, %v1504
        %v1522 = vsel %vm1520, %v1510, 2102212464
        %v1523 = vsel %vm1519, %v1507, %v1522
        %v1524 = vsel %vm1518, %v1521, %v1523
        %v1525 = vsel %vm1517, %v1504, %v1507
        %v1526 = vsel %vm1520, %v1513, 920167782
        %v1527 = vsel %vm1519, %v1510, %v1526
        %v1528 = vsel %vm1518, %v1525, %v1527
        %v1529 = vsel %vm1517, %v1507, %v1510
        %v1530 = vsel %vm1520, %v1516, 1326507024
        %v1531 = vsel %vm1519, %v1513, %v1530
        %v1532 = vsel %vm1518, %v1529, %v1531
        %v1533 = vshll.u32 %v1493, 8
        %v1534 = vand.u32 %v1533, 65535
        %v1535 = vshrl.u32 %v1533, 16
        %v1536 = vand.u32 %v1532, 65535
        %v1537 = vshrl.u32 %v1532, 16
        %v1538 = vmul.u32 %v1534, %v1536
        %v1539 = vmul.u32 %v1534, %v1537
        %v1540 = vmul.u32 %v1535, %v1536
        %v1541 = vmul.u32 %v1535, %v1537
        %v1542 = vshll.u32 %v1539, 16
        %v1543 = vshrl.u32 %v1539, 16
        %v1544 = vshll.u32 %v1540, 16
        %v1545 = vshrl.u32 %v1540, 16
        %vm1546 = vc.u32 %v1538, %v1542
        %v1547 = vsel %vm1546, 1, 0
        %v1548 = vadd.s32 %v1538, %v1542
        %v1549 = vadd.s32 %v1541, %v1547
        %vm1550 = vc.u32 %v1548, %v1544
        %v1551 = vsel %vm1550, 1, 0
        %v1552 = vadd.s32 %v1548, %v1544
        %v1553 = vadd.s32 %v1549, %v1551
        %v1554 = vadd.s32 %v1553, %v1543
        %v1555 = vadd.s32 %v1554, %v1545
        %v1556 = vand.u32 %v1533, 65535
        %v1557 = vshrl.u32 %v1533, 16
        %v1558 = vand.u32 %v1528, 65535
        %v1559 = vshrl.u32 %v1528, 16
        %v1560 = vmul.u32 %v1556, %v1558
        %v1561 = vmul.u32 %v1556, %v1559
        %v1562 = vmul.u32 %v1557, %v1558
        %v1563 = vmul.u32 %v1557, %v1559
        %v1564 = vshll.u32 %v1561, 16
        %v1565 = vshrl.u32 %v1561, 16
        %v1566 = vshll.u32 %v1562, 16
        %v1567 = vshrl.u32 %v1562, 16
        %vm1568 = vc.u32 %v1560, %v1564
        %v1569 = vsel %vm1568, 1, 0
        %v1570 = vadd.s32 %v1560, %v1564
        %v1571 = vadd.s32 %v1563, %v1569
        %vm1572 = vc.u32 %v1570, %v1566
        %v1573 = vsel %vm1572, 1, 0
        %v1574 = vadd.s32 %v1570, %v1566
        %v1575 = vadd.s32 %v1571, %v1573
        %v1576 = vadd.s32 %v1575, %v1565
        %v1577 = vadd.s32 %v1576, %v1567
        %v1578 = vmul.u32 %v1533, %v1524
        %v1579 = vadd.s32 %v1555, %v1574
        %vm1580 = vc.u32 %v1555, %v1574
        %v1581 = vadd.s32 %v1577, 1
        %v1582 = vsel %vm1580, %v1581, %v1577
        %v1583 = vadd.s32 %v1578, %v1582
        %v1584 = vadd.s32 %v1583, 536870912
        %v1585 = vshrl.u32 %v1584, 30
        %v1586 = vshll.u32 %v1585, 30
        %v1587 = vsub.s32 %v1583, %v1586
        %vm1588 = vcmp.lt.s32.totalorder %v1587, 0
        %v1589 = vsub.s32 0, %v1587
        %v1590 = vsel %vm1588, %v1589, %v1587
        %v1591 = vclz %v1590
        %v1592 = vsub.s32 %v1591, 2
        %vm1593 = vcmp.gt.s32.totalorder 0, %v1592
        %v1594 = vsel %vm1593, 0, %v1592
        %v1595 = vsub.s32 32, %v1594
        %v1596 = vshll.u32 %v1587, %v1594
        %v1597 = vshrl.u32 %v1579, %v1595
        %v1598 = vor.u32 %v1596, %v1597
        %v1599 = vsub.s32 4294967266, %v1594
        %v1600 = vadd.s32 %v1599, 127
        %v1601 = vshll.u32 %v1600, 23
        %v1602 = vor.u32 4788187, %v1601
        %v1603 = vand.u32 2147483647, %v1602
        %v1605 = vcvt.s32.f32 %v1598
        %v1606 = vmul.f32 %v1605, %v1603
        %v1607 = vxor.u32 %v1606, 2147483648
        %v1608 = vsel %vm1487, %v1607, %v1606
        %v1609 = vsub.s32 4, %v1585
        %v1610 = vsel %vm1487, %v1609, %v1585
        %v1611 = vsel %vm1486, %v1484, %v1608
        %v1612 = vsel %vm1486, 0, %v1610
        %v1613 = vmul.f32 %v1611, %v1611
        %v1614 = vmul.f32 %v1613, -0.001358992
        %v1615 = vadd.f32 %v1614, 0.041655596
        %v1616 = vmul.f32 %v1613, %v1615
        %v1617 = vadd.f32 %v1616, -0.4999988
        %v1618 = vmul.f32 %v1613, %v1617
        %v1619 = vadd.f32 1.0, %v1618
        %v1620 = vmul.f32 %v1611, %v1611
        %v1621 = vmul.f32 %v1620, -0.00019511016
        %v1622 = vadd.f32 %v1621, 0.008332121
        %v1623 = vmul.f32 %v1620, %v1622
        %v1624 = vadd.f32 %v1623, -0.16666654
        %v1625 = vmul.f32 %v1620, %v1624
        %v1626 = vadd.f32 %v1625, 1.0
        %v1627 = vmul.f32 %v1626, %v1611
        %vm1628 = vweird.f32 %v1484
        %v1629 = vand.u32 %v1612, 3
        %vm1630 = vcmp.lt.s32.totalorder %v1629, 2
        %vm1631 = vcmp.eq.s32.totalorder %v1629, 0
        %v1632 = vxor.u32 %v1627, 2147483648
        %v1633 = vsel %vm1631, %v1619, %v1632
        %vm1634 = vcmp.eq.s32.totalorder %v1629, 2
        %v1635 = vxor.u32 %v1619, 2147483648
        %v1636 = vsel %vm1634, %v1635, %v1627
        %v1637 = vsel %vm1630, %v1633, %v1636
        %v1638 = vsel %vm1628, nan, %v1637
        %s1639 = scalar_lea.vmem %s190, 4 [#allocation7]
        %1640 = vst.msk [vmem:[%s1639] sm:$0xf] %vm225, %v1638
        %s1641 = sand.u32 %s95, 1
        %s1642 = scalar_lea.sflag [#allocation3], %s1641
        %s1643 = sand.u32 %s95, 1
        %s1644 = smul.addr %s1643, 8
        %s1645 = scalar_lea.vmem [#allocation7], %s1644
        // Predicated region
        $region41: #{tpu_custom_call.1} parent=31 // pred_check
          %p1646 = pneg %p105
        $region42: #{tpu_custom_call.1} parent=31 // pred_check_branch
          %1648 = sbr.rel (%p1646) target = $region44
        $region43: #{tpu_custom_call.1} parent=31 // pred_region
          %1650 = vsyncadd %s1642, 0
          %s1651 = smul.addr %s19, 2
          %s1652 = smul.addr %s1651, 4
          %s1653 = scalar_lea.hbm %s3, %s1652
          %s1654 = sshll.u32 %s1645, 4
          %s1655 = int_to_ptr.vmem [resolvable:$true] %s1654
          %s1656 = sshll.u32 %s1653, 4
          %s1657 = int_to_ptr.hbm [resolvable:$true] %s1656
          %1662 = dma.vmem_to_hbm [thread:$0]  %s1655, 128, %s1657, %s1642, 64, 64, 4
        $region44: #{tpu_custom_call.1} parent=31 // pred_fallthru
          _
      $region32: #{tpu_custom_call.1} parent=5 // pred_fallthru
        _
      %p1663 = scmp.le.s32.totalorder 2, %s14
      // Predicated region
      $region45: #{tpu_custom_call.1} parent=5 // pred_check
        %p1664 = pneg %p1663
      $region46: #{tpu_custom_call.1} parent=5 // pred_check_branch
        %1666 = sbr.rel (%p1664) target = $region48
      $region47: #{tpu_custom_call.1} parent=5 // pred_region
        %s1667 = ssub.s32 %s14, 2
        // Predicated region
        $region49: #{tpu_custom_call.1} parent=47 // pred_check
          %p1668 = pneg %p111
        $region50: #{tpu_custom_call.1} parent=47 // pred_check_branch
          %1670 = sbr.rel (%p1668) target = $region52
        $region51: #{tpu_custom_call.1} parent=47 // pred_region
          %s1671 = sand.u32 %s96, 1
          %s1672 = scalar_lea.sflag [#allocation3], %s1671
          %s1673 = sand.u32 %s96, 1
          %s1674 = smul.addr %s1673, 8
          %s1675 = scalar_lea.vmem [#allocation7], %s1674
          %1677 = dma.done %s1672, 128
        $region52: #{tpu_custom_call.1} parent=47 // pred_fallthru
          _
      $region48: #{tpu_custom_call.1} parent=5 // pred_fallthru
        _
    $region6: #{tpu_custom_call.1} parent=1 // loop_footer
      %s18 = sadd.s32 1, %s14
    $region7: #{tpu_custom_call.1} parent=1 // loop_footer_branch
      %13 = sbr.rel target = $region3
    $region8: #{tpu_custom_call.1} parent=1 // loop_exit
      _
    %1678 = vsyncpa [#allocation3], 1
    %s1679 = scalar_lea.sflag [#allocation3], 1
    %1680 = vsyncpa %s1679, 1
    %1681 = vsyncpa [#allocation4], 1
    %s1682 = scalar_lea.sflag [#allocation4], 1
    %1683 = vsyncpa %s1682, 1
    %1684 = vsyncpa [#allocation6], 1

</llo_original>
